<compile_context>
chip_gen: v7x
topology: tpu7x:2x2x1
jax: 0.10.0
libtpu: 0.0.40
codegen_flags: <defaults>
</compile_context>

<pallas_src>
import functools
import math

import jax
import jax.numpy as jnp
from jax import lax
from jax.experimental import pallas as pl
from jax.experimental.pallas import tpu as pltpu


# ---------------------------------------------------------------------------
# Fused CAEM kernel.  One grid step == one block of Bblk batch elements,
# BOTH visual streams:
#   tf     = tanh(txt @ Wt + bt) * textual_mask          text_query_emb (shared)
#   lt     = (tf @ Wlt + blt) * word_mask                logits_text    (shared)
#   y      = relu([vis; aug] @ Wf + bf)                  1x1 conv + ReLU
#   vis_h  = pool_mat @ y                                AvgPool1d(k)
#   vf     = tanh(vis_h @ Wv + bv)                       visual_content_emb
#   sim    = tf @ vf^T / sqrt(H)                         cross_similarity
#   lv^T   = Wlv^T @ vf^T + blv^T                        logits_visual (3, T)
#   liou   = (vf @ Wiou) @ vf^T                          logits_iou    (T, T)
# ---------------------------------------------------------------------------
def _caem_kernel(pool_ref, vis_ref, aug_ref, txt_ref, masks_ref,
                 wf_ref, bf_ref,
                 wt_ref, bt_ref, wv_ref, bv_ref,
                 wlt_ref, blt_ref, wlvt_ref, blvt_ref, wiou_ref,
                 tq_ref, lt_ref, vc_ref, sim_ref, lvt_ref, liou_ref,
                 *, inv_sqrt_h):
    f32 = jnp.float32
    bb, t_raw, dv = vis_ref.shape
    _, l, dt = txt_ref.shape
    h = wf_ref.shape[1]
    v = wlt_ref.shape[1]
    t_pool = pool_ref.shape[0] // (2 * bb)
    # Contract the trailing dim of both operands: A @ B^T (MXU-native
    # transposed-rhs path, no explicit transpose / XLU work).
    dimn = (((1,), (1,)), ((), ()))

    # ---- text branch: stream-independent, computed ONCE per batch block ----
    txt = txt_ref[...].reshape(bb * l, dt)
    tf_flat = jnp.tanh(jnp.dot(txt, wt_ref[...], preferred_element_type=f32)
                       + bt_ref[...])
    masks = masks_ref[...]                                   # (Bb, L, 2)
    tmask = masks[..., 0:1]
    wmask = masks[..., 1:2]
    tf = tf_flat.reshape(bb, l, h) * tmask                   # (Bb, L, H)
    lt = (jnp.dot(tf.reshape(bb * l, h), wlt_ref[...],
                  preferred_element_type=f32)
          + blt_ref[...]).reshape(bb, l, v) * wmask
    tq_ref[...] = tf.astype(tq_ref.dtype)
    lt_ref[...] = lt.astype(lt_ref.dtype)

    # ---- frame layer on BOTH streams at once: 1x1 conv + ReLU + avg pool ---
    xv = jnp.concatenate([vis_ref[...].reshape(bb * t_raw, dv),
                          aug_ref[...].reshape(bb * t_raw, dv)],
                         axis=0)                             # (2*Bb*T_raw, Dv)
    y = jnp.maximum(jnp.dot(xv, wf_ref[...], preferred_element_type=f32)
                    + bf_ref[...], 0.0)
    # Block-diagonal pooling matrix is a constant operand (built once in the
    # wrapper, constant index_map), not rebuilt per step.
    vis_h = jnp.dot(pool_ref[...], y, preferred_element_type=f32)  # (2*Bb*T, H)

    # ---- visual projection + IoU bilinear lhs, flattened for MXU M-fill ----
    vf_flat = jnp.tanh(jnp.dot(vis_h, wv_ref[...], preferred_element_type=f32)
                       + bv_ref[...])
    vfw_flat = jnp.dot(vf_flat, wiou_ref[...], preferred_element_type=f32)
    vf = vf_flat.reshape(2, bb, t_pool, h)
    vfw = vfw_flat.reshape(2, bb, t_pool, h)
    vc_ref[...] = vf.astype(vc_ref.dtype)

    # ---- per-(stream, batch) heads (small, statically unrolled) ------------
    wlvt = wlvt_ref[...]                                     # (3, H)
    blvt = blvt_ref[...]                                     # (3, 1)
    for s in range(2):
        for b in range(bb):
            vf_sb = vf[s, b]                                 # (T, H)
            vfw_sb = vfw[s, b]                               # (T, H)
            tf_b = tf[b]                                     # (L, H)
            sim_sb = lax.dot_general(tf_b, vf_sb, dimn,
                                     preferred_element_type=f32) * inv_sqrt_h
            lvt_sb = lax.dot_general(wlvt, vf_sb, dimn,
                                     preferred_element_type=f32) + blvt
            liou_sb = lax.dot_general(vfw_sb, vf_sb, dimn,
                                      preferred_element_type=f32)
            sim_ref[s, b] = sim_sb.astype(sim_ref.dtype)
            lvt_ref[s, b] = lvt_sb.astype(lvt_ref.dtype)
            liou_ref[s, b] = liou_sb.astype(liou_ref.dtype)


def caem_forward(textual_input, textual_mask, word_mask,
                 visual_input, aug_visual_input, frame_params, bert_params,
                 block_b=None):
    """Returns the 14-tuple of the PyTorch CAEM.forward."""
    B, L, Dt = textual_input.shape
    _, T_raw, Dv = visual_input.shape
    H = frame_params["w"].shape[1]
    pool_k = frame_params["pool_k"]
    # TODO(synk): PyTorch AvgPool1d truncates a trailing partial window; here
    # we require exact divisibility instead of silently diverging.
    assert T_raw % pool_k == 0, "T_raw must be divisible by the pool kernel"
    T = T_raw // pool_k
    V = bert_params["wlt"].shape[1]
    inv_sqrt_h = 1.0 / math.sqrt(H)

    if block_b is None:
        block_b = 2 if B % 2 == 0 else 1
    assert B % block_b == 0
    grid_b = B // block_b

    # Pack the two (B, L, 1) masks into a single (B, L, 2) operand.
    masks = jnp.concatenate([textual_mask, word_mask], axis=-1)

    # Block-diagonal AvgPool1d(k) matrix covering the flattened
    # (stream, batch-block, time) axis of one grid step; constant operand.
    n_raw = 2 * block_b * T_raw
    n_pool = 2 * block_b * T
    cols = jnp.arange(n_raw, dtype=jnp.int32) // pool_k
    rows = jnp.arange(n_pool, dtype=jnp.int32)
    pool_mat = (cols[None, :] == rows[:, None]).astype(jnp.float32) / pool_k
    # TODO(synk): at production Bblk*T this matrix grows quadratically; prefer
    # a strided sublane-sum pooling there.

    kernel = functools.partial(_caem_kernel, inv_sqrt_h=inv_sqrt_h)

    def wspec(shape):  # replicated (constant index_map) operand
        return pl.BlockSpec(shape, lambda i: (0,) * len(shape))

    outs = pl.pallas_call(
        kernel,
        out_shape=(
            jax.ShapeDtypeStruct((B, L, H), jnp.float32),     # text_query_emb (shared)
            jax.ShapeDtypeStruct((B, L, V), jnp.float32),     # logits_text    (shared)
            jax.ShapeDtypeStruct((2, B, T, H), jnp.float32),  # visual_content_emb
            jax.ShapeDtypeStruct((2, B, L, T), jnp.float32),  # cross_similarity
            jax.ShapeDtypeStruct((2, B, 3, T), jnp.float32),  # logits_visual (pre-transposed)
            jax.ShapeDtypeStruct((2, B, T, T), jnp.float32),  # logits_iou
        ),
        grid_spec=pltpu.PrefetchScalarGridSpec(
            num_scalar_prefetch=0,
            grid=(grid_b,),
            in_specs=[
                wspec((n_pool, n_raw)),                            # pool matrix
                pl.BlockSpec((block_b, T_raw, Dv), lambda i: (i, 0, 0)),
                pl.BlockSpec((block_b, T_raw, Dv), lambda i: (i, 0, 0)),
                pl.BlockSpec((block_b, L, Dt), lambda i: (i, 0, 0)),
                pl.BlockSpec((block_b, L, 2), lambda i: (i, 0, 0)),
                wspec((Dv, H)), wspec((1, H)),                     # frame conv w, b
                wspec((Dt, H)), wspec((1, H)),                     # text proj
                wspec((H, H)), wspec((1, H)),                      # visual proj
                wspec((H, V)), wspec((1, V)),                      # text logits
                wspec((3, H)), wspec((3, 1)),                      # visual logits (pre-T)
                wspec((H, H)),                                     # iou bilinear
            ],
            out_specs=[
                pl.BlockSpec((block_b, L, H), lambda i: (i, 0, 0)),
                pl.BlockSpec((block_b, L, V), lambda i: (i, 0, 0)),
                pl.BlockSpec((2, block_b, T, H), lambda i: (0, i, 0, 0)),
                pl.BlockSpec((2, block_b, L, T), lambda i: (0, i, 0, 0)),
                pl.BlockSpec((2, block_b, 3, T), lambda i: (0, i, 0, 0)),
                pl.BlockSpec((2, block_b, T, T), lambda i: (0, i, 0, 0)),
            ],
        ),
        compiler_params=pltpu.CompilerParams(
            dimension_semantics=("parallel",),
            vmem_limit_bytes=32 * 1024 * 1024),
    )(pool_mat, visual_input, aug_visual_input, textual_input, masks,
      frame_params["w"], frame_params["b"],
      bert_params["wt"], bert_params["bt"],
      bert_params["wv"], bert_params["bv"],
      bert_params["wlt"], bert_params["blt"],
      bert_params["wlv_t"], bert_params["blv_t"],
      bert_params["wiou"])

    tq, lt, vc, sim, lvt, liou = outs
    iou_mask_map = bert_params["iou_mask_map"]               # static (T, T) constant

    # Text-side tensors are stream-independent: return the same array for the
    # original and the augmented slots (identical by construction).
    return (lt, lvt[0], liou[0], iou_mask_map, vc[0], tq, sim[0],
            lt, lvt[1], liou[1], iou_mask_map, vc[1], tq, sim[1])


# ---------------------------------------------------------------------------
# Pure-JAX reference (for a loose numeric sanity check).
# ---------------------------------------------------------------------------
def caem_reference(textual_input, textual_mask, word_mask, vis, aug,
                   frame_params, bert_params):
    def frame(vx):
        y = jnp.maximum(
            jnp.einsum('btd,dh->bth', vx, frame_params["w"])
            + frame_params["b"][0], 0.0)
        Bq, Tr, Hh = y.shape
        k = frame_params["pool_k"]
        return y.reshape(Bq, Tr // k, k, Hh).mean(axis=2)

    def bert(vis_h):
        H = bert_params["wt"].shape[1]
        tf = jnp.tanh(jnp.einsum('bld,dh->blh', textual_input,
                                 bert_params["wt"]) + bert_params["bt"][0])
        tf = tf * textual_mask
        vf = jnp.tanh(jnp.einsum('bth,hk->btk', vis_h,
                                 bert_params["wv"]) + bert_params["bv"][0])
        sim = jnp.einsum('blh,bth->blt', tf, vf) / math.sqrt(H)
        lt = (jnp.einsum('blh,hv->blv', tf, bert_params["wlt"])
              + bert_params["blt"][0]) * word_mask
        lv = (jnp.einsum('bth,vh->bvt', vf, bert_params["wlv_t"])
              + bert_params["blv_t"][:, 0][None, :, None])
        liou = jnp.einsum('bth,hk,bqk->btq', vf, bert_params["wiou"], vf)
        return lt, lv, liou, vf, tf, sim

    return bert(frame(vis)), bert(frame(aug))


# ---------------------------------------------------------------------------
# Deterministic parameter construction.
# ---------------------------------------------------------------------------
def make_params(key, Dv, H, Dt, V, T_raw, pool_k):
    ks = jax.random.split(key, 9)
    T_pool = T_raw // pool_k
    frame_params = {
        "w": 0.02 * jax.random.normal(ks[0], (Dv, H), jnp.float32),
        "b": 0.02 * jax.random.normal(ks[1], (1, H), jnp.float32),
        "pool_k": pool_k,
    }
    wlv = 0.02 * jax.random.normal(ks[7], (H, 3), jnp.float32)
    bert_params = {
        "wt": 0.02 * jax.random.normal(ks[2], (Dt, H), jnp.float32),
        "bt": 0.02 * jax.random.normal(ks[3], (1, H), jnp.float32),
        "wv": 0.02 * jax.random.normal(ks[4], (H, H), jnp.float32),
        "bv": 0.02 * jax.random.normal(ks[5], (1, H), jnp.float32),
        "wlt": 0.02 * jax.random.normal(ks[6], (H, V), jnp.float32),
        "blt": jnp.zeros((1, V), jnp.float32),
        # visual-logit weights stored pre-transposed so the kernel emits
        # logits_visual directly in its final (3, T) layout.
        "wlv_t": wlv.T,                                  # (3, H)
        "blv_t": jnp.zeros((3, 1), jnp.float32),
        "wiou": 0.02 * jax.random.normal(ks[8], (H, H), jnp.float32),
        # static valid-proposal mask (end >= start), hoisted out of forward.
        "iou_mask_map": jnp.triu(jnp.ones((T_pool, T_pool), jnp.float32)),
    }
    return frame_params, bert_params


if __name__ == "__main__":
    # Small shapes: batch=2, raw video frames=16, visual dim=64, pool k=2
    # -> 8 pooled clips; text length=8, text dim=48, hidden=32, text vocab=16.
    B, T_raw, Dv = 2, 16, 64
    pool_k, H = 2, 32
    L, Dt, V = 8, 48, 16

    key = jax.random.PRNGKey(0)
    k_in, k_param = jax.random.split(key)
    ki = jax.random.split(k_in, 5)

    textual_input = jax.random.normal(ki[0], (B, L, Dt), jnp.float32)
    textual_mask = (jax.random.uniform(ki[1], (B, L, 1)) > 0.2).astype(jnp.float32)
    word_mask = (jax.random.uniform(ki[2], (B, L, 1)) > 0.5).astype(jnp.float32)
    visual_input = jax.random.normal(ki[3], (B, T_raw, Dv), jnp.float32)
    aug_visual_input = jax.random.normal(ki[4], (B, T_raw, Dv), jnp.float32)

    frame_params, bert_params = make_params(k_param, Dv, H, Dt, V, T_raw, pool_k)

    fwd = jax.jit(functools.partial(caem_forward,
                                    frame_params=frame_params,
                                    bert_params=bert_params))
    outs = fwd(textual_input, textual_mask, word_mask,
               visual_input, aug_visual_input)
    jax.block_until_ready(outs)

    assert len(outs) == 14
    T = T_raw // pool_k
    # Shape sanity (matches the PyTorch return layout).
    assert outs[0].shape == (B, L, V)        # logits_text
    assert outs[1].shape == (B, 3, T)        # logits_visual (transposed)
    assert outs[2].shape == (B, T, T)        # logits_iou
    assert outs[3].shape == (T, T)           # iou_mask_map
    assert outs[4].shape == (B, T, H)        # visual_content_emb
    assert outs[5].shape == (B, L, H)        # text_query_emb
    assert outs[6].shape == (B, L, T)        # cross_similarity
    assert outs[8].shape == (B, 3, T)        # aug logits_visual

    # Loose numeric check against a pure-JAX reference (tolerant of MXU f32
    # precision differences; catches structural / wiring errors).
    (r_lt, r_lv, r_liou, r_vf, r_tf, r_sim), \
        (a_lt, a_lv, a_liou, a_vf, a_tf, a_sim) = caem_reference(
            textual_input, textual_mask, word_mask,
            visual_input, aug_visual_input, frame_params, bert_params)
    checks = [
        (outs[0], r_lt), (outs[1], r_lv), (outs[2], r_liou),
        (outs[4], r_vf), (outs[5], r_tf), (outs[6], r_sim),
        (outs[7], a_lt), (outs[8], a_lv), (outs[9], a_liou),
        (outs[11], a_vf), (outs[12], a_tf), (outs[13], a_sim),
    ]
    for got, want in checks:
        assert jnp.allclose(got, want, rtol=2e-2, atol=2e-2), "numeric mismatch"

    print("KERNEL_OK")
</pallas_src>

<mosaic_0001>
module attributes {stable_mosaic.version = 11 : i64} {
  func.func @_caem_kernel(%arg0: i32, %arg1: memref<32x64xf32, #tpu.memory_space<vmem>>, %arg2: memref<2x16x64xf32, #tpu.memory_space<vmem>>, %arg3: memref<2x16x64xf32, #tpu.memory_space<vmem>>, %arg4: memref<2x8x48xf32, #tpu.memory_space<vmem>>, %arg5: memref<2x8x2xf32, #tpu.memory_space<vmem>>, %arg6: memref<64x32xf32, #tpu.memory_space<vmem>>, %arg7: memref<1x32xf32, #tpu.memory_space<vmem>>, %arg8: memref<48x32xf32, #tpu.memory_space<vmem>>, %arg9: memref<1x32xf32, #tpu.memory_space<vmem>>, %arg10: memref<32x32xf32, #tpu.memory_space<vmem>>, %arg11: memref<1x32xf32, #tpu.memory_space<vmem>>, %arg12: memref<32x16xf32, #tpu.memory_space<vmem>>, %arg13: memref<1x16xf32, #tpu.memory_space<vmem>>, %arg14: memref<3x32xf32, #tpu.memory_space<vmem>>, %arg15: memref<3x1xf32, #tpu.memory_space<vmem>>, %arg16: memref<32x32xf32, #tpu.memory_space<vmem>>, %arg17: memref<2x8x32xf32, #tpu.memory_space<vmem>>, %arg18: memref<2x8x16xf32, #tpu.memory_space<vmem>>, %arg19: memref<2x2x8x32xf32, #tpu.memory_space<vmem>>, %arg20: memref<2x2x8x8xf32, #tpu.memory_space<vmem>>, %arg21: memref<2x2x3x8xf32, #tpu.memory_space<vmem>>, %arg22: memref<2x2x8x8xf32, #tpu.memory_space<vmem>>) attributes {dimension_semantics = [#tpu.dimension_semantics<parallel>], iteration_bounds = array<i64: 1>, scalar_prefetch = 0 : i64, scratch_operands = 0 : i64, tpu.core_type = #tpu.core_type<tc>, window_params = [{pipeline_mode = #tpu.pipeline_mode<synchronous>, transform_indices = @transform_0, window_bounds = array<i64: 32, 64>}, {transform_indices = @transform_1, window_bounds = array<i64: 2, 16, 64>}, {transform_indices = @transform_2, window_bounds = array<i64: 2, 16, 64>}, {transform_indices = @transform_3, window_bounds = array<i64: 2, 8, 48>}, {transform_indices = @transform_4, window_bounds = array<i64: 2, 8, 2>}, {pipeline_mode = #tpu.pipeline_mode<synchronous>, transform_indices = @transform_5, window_bounds = array<i64: 64, 32>}, {pipeline_mode = #tpu.pipeline_mode<synchronous>, transform_indices = @transform_6, window_bounds = array<i64: 1, 32>}, {pipeline_mode = #tpu.pipeline_mode<synchronous>, transform_indices = @transform_7, window_bounds = array<i64: 48, 32>}, {pipeline_mode = #tpu.pipeline_mode<synchronous>, transform_indices = @transform_8, window_bounds = array<i64: 1, 32>}, {pipeline_mode = #tpu.pipeline_mode<synchronous>, transform_indices = @transform_9, window_bounds = array<i64: 32, 32>}, {pipeline_mode = #tpu.pipeline_mode<synchronous>, transform_indices = @transform_10, window_bounds = array<i64: 1, 32>}, {pipeline_mode = #tpu.pipeline_mode<synchronous>, transform_indices = @transform_11, window_bounds = array<i64: 32, 16>}, {pipeline_mode = #tpu.pipeline_mode<synchronous>, transform_indices = @transform_12, window_bounds = array<i64: 1, 16>}, {pipeline_mode = #tpu.pipeline_mode<synchronous>, transform_indices = @transform_13, window_bounds = array<i64: 3, 32>}, {pipeline_mode = #tpu.pipeline_mode<synchronous>, transform_indices = @transform_14, window_bounds = array<i64: 3, 1>}, {pipeline_mode = #tpu.pipeline_mode<synchronous>, transform_indices = @transform_15, window_bounds = array<i64: 32, 32>}, {transform_indices = @transform_16, window_bounds = array<i64: 2, 8, 32>}, {transform_indices = @transform_17, window_bounds = array<i64: 2, 8, 16>}, {transform_indices = @transform_18, window_bounds = array<i64: 2, 2, 8, 32>}, {transform_indices = @transform_19, window_bounds = array<i64: 2, 2, 8, 8>}, {transform_indices = @transform_20, window_bounds = array<i64: 2, 2, 3, 8>}, {transform_indices = @transform_21, window_bounds = array<i64: 2, 2, 8, 8>}]} {
    %c0 = arith.constant 0 : index
    %c0_0 = arith.constant 0 : index
    %c0_1 = arith.constant 0 : index
    %0 = vector.load %arg4[%c0, %c0_0, %c0_1] : memref<2x8x48xf32, #tpu.memory_space<vmem>>, vector<2x8x48xf32>
    %1 = vector.shape_cast %0 : vector<2x8x48xf32> to vector<16x48xf32>
    %c0_2 = arith.constant 0 : index
    %c0_3 = arith.constant 0 : index
    %2 = vector.load %arg8[%c0_2, %c0_3] : memref<48x32xf32, #tpu.memory_space<vmem>>, vector<48x32xf32>
    %cst = arith.constant dense<0.000000e+00> : vector<16x32xf32>
    %3 = tpu.matmul %1, %2, %cst {dimension_numbers = #tpu.dot_dimension_numbers<[1], [0], [0], [1], [0, 0, 1, 1], [], []>} : vector<16x48xf32>, vector<48x32xf32>, vector<16x32xf32> -> vector<16x32xf32>
    %c0_4 = arith.constant 0 : index
    %c0_5 = arith.constant 0 : index
    %4 = vector.load %arg9[%c0_4, %c0_5] : memref<1x32xf32, #tpu.memory_space<vmem>>, vector<1x32xf32>
    %5 = vector.broadcast %4 : vector<1x32xf32> to vector<16x32xf32>
    %6 = arith.addf %3, %5 : vector<16x32xf32>
    %7 = math.tanh %6 : vector<16x32xf32>
    %c0_6 = arith.constant 0 : index
    %c0_7 = arith.constant 0 : index
    %c0_8 = arith.constant 0 : index
    %8 = vector.load %arg5[%c0_6, %c0_7, %c0_8] : memref<2x8x2xf32, #tpu.memory_space<vmem>>, vector<2x8x2xf32>
    %9 = vector.extract_strided_slice %8 {offsets = [0, 0, 0], sizes = [2, 8, 1], strides = [1, 1, 1]} : vector<2x8x2xf32> to vector<2x8x1xf32>
    %10 = vector.extract_strided_slice %8 {offsets = [0, 0, 1], sizes = [2, 8, 1], strides = [1, 1, 1]} : vector<2x8x2xf32> to vector<2x8x1xf32>
    %11 = vector.shape_cast %7 : vector<16x32xf32> to vector<2x8x32xf32>
    %12 = vector.broadcast %9 : vector<2x8x1xf32> to vector<2x8x32xf32>
    %13 = arith.mulf %11, %12 : vector<2x8x32xf32>
    %14 = vector.shape_cast %13 : vector<2x8x32xf32> to vector<16x32xf32>
    %c0_9 = arith.constant 0 : index
    %c0_10 = arith.constant 0 : index
    %15 = vector.load %arg12[%c0_9, %c0_10] : memref<32x16xf32, #tpu.memory_space<vmem>>, vector<32x16xf32>
    %cst_11 = arith.constant dense<0.000000e+00> : vector<16x16xf32>
    %16 = tpu.matmul %14, %15, %cst_11 {dimension_numbers = #tpu.dot_dimension_numbers<[1], [0], [0], [1], [0, 0, 1, 1], [], []>} : vector<16x32xf32>, vector<32x16xf32>, vector<16x16xf32> -> vector<16x16xf32>
    %c0_12 = arith.constant 0 : index
    %c0_13 = arith.constant 0 : index
    %17 = vector.load %arg13[%c0_12, %c0_13] : memref<1x16xf32, #tpu.memory_space<vmem>>, vector<1x16xf32>
    %18 = vector.broadcast %17 : vector<1x16xf32> to vector<16x16xf32>
    %19 = arith.addf %16, %18 : vector<16x16xf32>
    %20 = vector.shape_cast %19 : vector<16x16xf32> to vector<2x8x16xf32>
    %21 = vector.broadcast %10 : vector<2x8x1xf32> to vector<2x8x16xf32>
    %22 = arith.mulf %20, %21 : vector<2x8x16xf32>
    %c0_14 = arith.constant 0 : index
    %c0_15 = arith.constant 0 : index
    %c0_16 = arith.constant 0 : index
    %23 = vector.load %arg17[%c0_14, %c0_15, %c0_16] : memref<2x8x32xf32, #tpu.memory_space<vmem>>, vector<2x8x32xf32>
    tpu.vector_store %arg17[%c0_14, %c0_15, %c0_16], %13 {strides = array<i32>} : memref<2x8x32xf32, #tpu.memory_space<vmem>>, vector<2x8x32xf32>,
    %c0_17 = arith.constant 0 : index
    %c0_18 = arith.constant 0 : index
    %c0_19 = arith.constant 0 : index
    %24 = vector.load %arg18[%c0_17, %c0_18, %c0_19] : memref<2x8x16xf32, #tpu.memory_space<vmem>>, vector<2x8x16xf32>
    tpu.vector_store %arg18[%c0_17, %c0_18, %c0_19], %22 {strides = array<i32>} : memref<2x8x16xf32, #tpu.memory_space<vmem>>, vector<2x8x16xf32>,
    %c0_20 = arith.constant 0 : index
    %c0_21 = arith.constant 0 : index
    %c0_22 = arith.constant 0 : index
    %25 = vector.load %arg2[%c0_20, %c0_21, %c0_22] : memref<2x16x64xf32, #tpu.memory_space<vmem>>, vector<2x16x64xf32>
    %26 = vector.shape_cast %25 : vector<2x16x64xf32> to vector<32x64xf32>
    %c0_23 = arith.constant 0 : index
    %c0_24 = arith.constant 0 : index
    %c0_25 = arith.constant 0 : index
    %27 = vector.load %arg3[%c0_23, %c0_24, %c0_25] : memref<2x16x64xf32, #tpu.memory_space<vmem>>, vector<2x16x64xf32>
    %28 = vector.shape_cast %27 : vector<2x16x64xf32> to vector<32x64xf32>
    %29 = tpu.concatenate %26, %28 in 0 : vector<32x64xf32>, vector<32x64xf32> -> vector<64x64xf32>
    %c0_26 = arith.constant 0 : index
    %c0_27 = arith.constant 0 : index
    %30 = vector.load %arg6[%c0_26, %c0_27] : memref<64x32xf32, #tpu.memory_space<vmem>>, vector<64x32xf32>
    %cst_28 = arith.constant dense<0.000000e+00> : vector<64x32xf32>
    %31 = tpu.matmul %29, %30, %cst_28 {dimension_numbers = #tpu.dot_dimension_numbers<[1], [0], [0], [1], [0, 0, 1, 1], [], []>} : vector<64x64xf32>, vector<64x32xf32>, vector<64x32xf32> -> vector<64x32xf32>
    %c0_29 = arith.constant 0 : index
    %c0_30 = arith.constant 0 : index
    %32 = vector.load %arg7[%c0_29, %c0_30] : memref<1x32xf32, #tpu.memory_space<vmem>>, vector<1x32xf32>
    %33 = vector.broadcast %32 : vector<1x32xf32> to vector<64x32xf32>
    %34 = arith.addf %31, %33 : vector<64x32xf32>
    %cst_31 = arith.constant 0.000000e+00 : f32
    %35 = vector.broadcast %cst_31 : f32 to vector<64x32xf32>
    %36 = arith.maximumf %34, %35 : vector<64x32xf32>
    %c0_32 = arith.constant 0 : index
    %c0_33 = arith.constant 0 : index
    %37 = vector.load %arg1[%c0_32, %c0_33] : memref<32x64xf32, #tpu.memory_space<vmem>>, vector<32x64xf32>
    %cst_34 = arith.constant dense<0.000000e+00> : vector<32x32xf32>
    %38 = tpu.matmul %37, %36, %cst_34 {dimension_numbers = #tpu.dot_dimension_numbers<[1], [0], [0], [1], [0, 0, 1, 1], [], []>} : vector<32x64xf32>, vector<64x32xf32>, vector<32x32xf32> -> vector<32x32xf32>
    %c0_35 = arith.constant 0 : index
    %c0_36 = arith.constant 0 : index
    %39 = vector.load %arg10[%c0_35, %c0_36] : memref<32x32xf32, #tpu.memory_space<vmem>>, vector<32x32xf32>
    %cst_37 = arith.constant dense<0.000000e+00> : vector<32x32xf32>
    %40 = tpu.matmul %38, %39, %cst_37 {dimension_numbers = #tpu.dot_dimension_numbers<[1], [0], [0], [1], [0, 0, 1, 1], [], []>} : vector<32x32xf32>, vector<32x32xf32>, vector<32x32xf32> -> vector<32x32xf32>
    %c0_38 = arith.constant 0 : index
    %c0_39 = arith.constant 0 : index
    %41 = vector.load %arg11[%c0_38, %c0_39] : memref<1x32xf32, #tpu.memory_space<vmem>>, vector<1x32xf32>
    %42 = vector.broadcast %41 : vector<1x32xf32> to vector<32x32xf32>
    %43 = arith.addf %40, %42 : vector<32x32xf32>
    %44 = math.tanh %43 : vector<32x32xf32>
    %c0_40 = arith.constant 0 : index
    %c0_41 = arith.constant 0 : index
    %45 = vector.load %arg16[%c0_40, %c0_41] : memref<32x32xf32, #tpu.memory_space<vmem>>, vector<32x32xf32>
    %cst_42 = arith.constant dense<0.000000e+00> : vector<32x32xf32>
    %46 = tpu.matmul %44, %45, %cst_42 {dimension_numbers = #tpu.dot_dimension_numbers<[1], [0], [0], [1], [0, 0, 1, 1], [], []>} : vector<32x32xf32>, vector<32x32xf32>, vector<32x32xf32> -> vector<32x32xf32>
    %47 = vector.shape_cast %44 : vector<32x32xf32> to vector<2x2x8x32xf32>
    %48 = vector.shape_cast %46 : vector<32x32xf32> to vector<2x2x8x32xf32>
    %c0_43 = arith.constant 0 : index
    %c0_44 = arith.constant 0 : index
    %c0_45 = arith.constant 0 : index
    %c0_46 = arith.constant 0 : index
    %49 = vector.load %arg19[%c0_43, %c0_44, %c0_45, %c0_46] : memref<2x2x8x32xf32, #tpu.memory_space<vmem>>, vector<2x2x8x32xf32>
    tpu.vector_store %arg19[%c0_43, %c0_44, %c0_45, %c0_46], %47 {strides = array<i32>} : memref<2x2x8x32xf32, #tpu.memory_space<vmem>>, vector<2x2x8x32xf32>,
    %c0_47 = arith.constant 0 : index
    %c0_48 = arith.constant 0 : index
    %50 = vector.load %arg14[%c0_47, %c0_48] : memref<3x32xf32, #tpu.memory_space<vmem>>, vector<3x32xf32>
    %c0_49 = arith.constant 0 : index
    %c0_50 = arith.constant 0 : index
    %51 = vector.load %arg15[%c0_49, %c0_50] : memref<3x1xf32, #tpu.memory_space<vmem>>, vector<3x1xf32>
    %52 = vector.extract_strided_slice %47 {offsets = [0, 0, 0, 0], sizes = [1, 1, 8, 32], strides = [1, 1, 1, 1]} : vector<2x2x8x32xf32> to vector<1x1x8x32xf32>
    %53 = vector.shape_cast %52 : vector<1x1x8x32xf32> to vector<8x32xf32>
    %54 = vector.extract_strided_slice %48 {offsets = [0, 0, 0, 0], sizes = [1, 1, 8, 32], strides = [1, 1, 1, 1]} : vector<2x2x8x32xf32> to vector<1x1x8x32xf32>
    %55 = vector.shape_cast %54 : vector<1x1x8x32xf32> to vector<8x32xf32>
    %56 = vector.extract_strided_slice %13 {offsets = [0, 0, 0], sizes = [1, 8, 32], strides = [1, 1, 1]} : vector<2x8x32xf32> to vector<1x8x32xf32>
    %57 = vector.shape_cast %56 : vector<1x8x32xf32> to vector<8x32xf32>
    %cst_51 = arith.constant dense<0.000000e+00> : vector<8x8xf32>
    %58 = tpu.matmul %57, %53, %cst_51 {dimension_numbers = #tpu.dot_dimension_numbers<[1], [1], [0], [0], [0, 0, 1, 0], [], []>} : vector<8x32xf32>, vector<8x32xf32>, vector<8x8xf32> -> vector<8x8xf32>
    %cst_52 = arith.constant 0.176776692 : f32
    %59 = vector.broadcast %cst_52 : f32 to vector<8x8xf32>
    %60 = arith.mulf %58, %59 : vector<8x8xf32>
    %cst_53 = arith.constant dense<0.000000e+00> : vector<3x8xf32>
    %61 = tpu.matmul %50, %53, %cst_53 {dimension_numbers = #tpu.dot_dimension_numbers<[1], [1], [0], [0], [0, 0, 1, 0], [], []>} : vector<3x32xf32>, vector<8x32xf32>, vector<3x8xf32> -> vector<3x8xf32>
    %62 = vector.broadcast %51 : vector<3x1xf32> to vector<3x8xf32>
    %63 = arith.addf %61, %62 : vector<3x8xf32>
    %cst_54 = arith.constant dense<0.000000e+00> : vector<8x8xf32>
    %64 = tpu.matmul %55, %53, %cst_54 {dimension_numbers = #tpu.dot_dimension_numbers<[1], [1], [0], [0], [0, 0, 1, 0], [], []>} : vector<8x32xf32>, vector<8x32xf32>, vector<8x8xf32> -> vector<8x8xf32>
    %c0_55 = arith.constant 0 : index
    %c0_56 = arith.constant 0 : index
    %c0_57 = arith.constant 0 : index
    %c0_58 = arith.constant 0 : index
    %65 = vector.load %arg20[%c0_55, %c0_56, %c0_57, %c0_58] : memref<2x2x8x8xf32, #tpu.memory_space<vmem>>, vector<1x1x8x8xf32>
    %66 = vector.shape_cast %65 : vector<1x1x8x8xf32> to vector<8x8xf32>
    %67 = vector.shape_cast %60 : vector<8x8xf32> to vector<1x1x8x8xf32>
    tpu.vector_store %arg20[%c0_55, %c0_56, %c0_57, %c0_58], %67 {strides = array<i32>} : memref<2x2x8x8xf32, #tpu.memory_space<vmem>>, vector<1x1x8x8xf32>,
    %c0_59 = arith.constant 0 : index
    %c0_60 = arith.constant 0 : index
    %c0_61 = arith.constant 0 : index
    %c0_62 = arith.constant 0 : index
    %68 = vector.load %arg21[%c0_59, %c0_60, %c0_61, %c0_62] : memref<2x2x3x8xf32, #tpu.memory_space<vmem>>, vector<1x1x3x8xf32>
    %69 = vector.shape_cast %68 : vector<1x1x3x8xf32> to vector<3x8xf32>
    %70 = vector.shape_cast %63 : vector<3x8xf32> to vector<1x1x3x8xf32>
    tpu.vector_store %arg21[%c0_59, %c0_60, %c0_61, %c0_62], %70 {strides = array<i32>} : memref<2x2x3x8xf32, #tpu.memory_space<vmem>>, vector<1x1x3x8xf32>,
    %c0_63 = arith.constant 0 : index
    %c0_64 = arith.constant 0 : index
    %c0_65 = arith.constant 0 : index
    %c0_66 = arith.constant 0 : index
    %71 = vector.load %arg22[%c0_63, %c0_64, %c0_65, %c0_66] : memref<2x2x8x8xf32, #tpu.memory_space<vmem>>, vector<1x1x8x8xf32>
    %72 = vector.shape_cast %71 : vector<1x1x8x8xf32> to vector<8x8xf32>
    %73 = vector.shape_cast %64 : vector<8x8xf32> to vector<1x1x8x8xf32>
    tpu.vector_store %arg22[%c0_63, %c0_64, %c0_65, %c0_66], %73 {strides = array<i32>} : memref<2x2x8x8xf32, #tpu.memory_space<vmem>>, vector<1x1x8x8xf32>,
    %74 = vector.extract_strided_slice %47 {offsets = [0, 1, 0, 0], sizes = [1, 1, 8, 32], strides = [1, 1, 1, 1]} : vector<2x2x8x32xf32> to vector<1x1x8x32xf32>
    %75 = vector.shape_cast %74 : vector<1x1x8x32xf32> to vector<8x32xf32>
    %76 = vector.extract_strided_slice %48 {offsets = [0, 1, 0, 0], sizes = [1, 1, 8, 32], strides = [1, 1, 1, 1]} : vector<2x2x8x32xf32> to vector<1x1x8x32xf32>
    %77 = vector.shape_cast %76 : vector<1x1x8x32xf32> to vector<8x32xf32>
    %78 = vector.extract_strided_slice %13 {offsets = [1, 0, 0], sizes = [1, 8, 32], strides = [1, 1, 1]} : vector<2x8x32xf32> to vector<1x8x32xf32>
    %79 = vector.shape_cast %78 : vector<1x8x32xf32> to vector<8x32xf32>
    %cst_67 = arith.constant dense<0.000000e+00> : vector<8x8xf32>
    %80 = tpu.matmul %79, %75, %cst_67 {dimension_numbers = #tpu.dot_dimension_numbers<[1], [1], [0], [0], [0, 0, 1, 0], [], []>} : vector<8x32xf32>, vector<8x32xf32>, vector<8x8xf32> -> vector<8x8xf32>
    %cst_68 = arith.constant 0.176776692 : f32
    %81 = vector.broadcast %cst_68 : f32 to vector<8x8xf32>
    %82 = arith.mulf %80, %81 : vector<8x8xf32>
    %cst_69 = arith.constant dense<0.000000e+00> : vector<3x8xf32>
    %83 = tpu.matmul %50, %75, %cst_69 {dimension_numbers = #tpu.dot_dimension_numbers<[1], [1], [0], [0], [0, 0, 1, 0], [], []>} : vector<3x32xf32>, vector<8x32xf32>, vector<3x8xf32> -> vector<3x8xf32>
    %84 = vector.broadcast %51 : vector<3x1xf32> to vector<3x8xf32>
    %85 = arith.addf %83, %84 : vector<3x8xf32>
    %cst_70 = arith.constant dense<0.000000e+00> : vector<8x8xf32>
    %86 = tpu.matmul %77, %75, %cst_70 {dimension_numbers = #tpu.dot_dimension_numbers<[1], [1], [0], [0], [0, 0, 1, 0], [], []>} : vector<8x32xf32>, vector<8x32xf32>, vector<8x8xf32> -> vector<8x8xf32>
    %c0_71 = arith.constant 0 : index
    %c1 = arith.constant 1 : index
    %c0_72 = arith.constant 0 : index
    %c0_73 = arith.constant 0 : index
    %87 = vector.load %arg20[%c0_71, %c1, %c0_72, %c0_73] : memref<2x2x8x8xf32, #tpu.memory_space<vmem>>, vector<1x1x8x8xf32>
    %88 = vector.shape_cast %87 : vector<1x1x8x8xf32> to vector<8x8xf32>
    %89 = vector.shape_cast %82 : vector<8x8xf32> to vector<1x1x8x8xf32>
    tpu.vector_store %arg20[%c0_71, %c1, %c0_72, %c0_73], %89 {strides = array<i32>} : memref<2x2x8x8xf32, #tpu.memory_space<vmem>>, vector<1x1x8x8xf32>,
    %c0_74 = arith.constant 0 : index
    %c1_75 = arith.constant 1 : index
    %c0_76 = arith.constant 0 : index
    %c0_77 = arith.constant 0 : index
    %90 = vector.load %arg21[%c0_74, %c1_75, %c0_76, %c0_77] : memref<2x2x3x8xf32, #tpu.memory_space<vmem>>, vector<1x1x3x8xf32>
    %91 = vector.shape_cast %90 : vector<1x1x3x8xf32> to vector<3x8xf32>
    %92 = vector.shape_cast %85 : vector<3x8xf32> to vector<1x1x3x8xf32>
    tpu.vector_store %arg21[%c0_74, %c1_75, %c0_76, %c0_77], %92 {strides = array<i32>} : memref<2x2x3x8xf32, #tpu.memory_space<vmem>>, vector<1x1x3x8xf32>,
    %c0_78 = arith.constant 0 : index
    %c1_79 = arith.constant 1 : index
    %c0_80 = arith.constant 0 : index
    %c0_81 = arith.constant 0 : index
    %93 = vector.load %arg22[%c0_78, %c1_79, %c0_80, %c0_81] : memref<2x2x8x8xf32, #tpu.memory_space<vmem>>, vector<1x1x8x8xf32>
    %94 = vector.shape_cast %93 : vector<1x1x8x8xf32> to vector<8x8xf32>
    %95 = vector.shape_cast %86 : vector<8x8xf32> to vector<1x1x8x8xf32>
    tpu.vector_store %arg22[%c0_78, %c1_79, %c0_80, %c0_81], %95 {strides = array<i32>} : memref<2x2x8x8xf32, #tpu.memory_space<vmem>>, vector<1x1x8x8xf32>,
    %96 = vector.extract_strided_slice %47 {offsets = [1, 0, 0, 0], sizes = [1, 1, 8, 32], strides = [1, 1, 1, 1]} : vector<2x2x8x32xf32> to vector<1x1x8x32xf32>
    %97 = vector.shape_cast %96 : vector<1x1x8x32xf32> to vector<8x32xf32>
    %98 = vector.extract_strided_slice %48 {offsets = [1, 0, 0, 0], sizes = [1, 1, 8, 32], strides = [1, 1, 1, 1]} : vector<2x2x8x32xf32> to vector<1x1x8x32xf32>
    %99 = vector.shape_cast %98 : vector<1x1x8x32xf32> to vector<8x32xf32>
    %100 = vector.extract_strided_slice %13 {offsets = [0, 0, 0], sizes = [1, 8, 32], strides = [1, 1, 1]} : vector<2x8x32xf32> to vector<1x8x32xf32>
    %101 = vector.shape_cast %100 : vector<1x8x32xf32> to vector<8x32xf32>
    %cst_82 = arith.constant dense<0.000000e+00> : vector<8x8xf32>
    %102 = tpu.matmul %101, %97, %cst_82 {dimension_numbers = #tpu.dot_dimension_numbers<[1], [1], [0], [0], [0, 0, 1, 0], [], []>} : vector<8x32xf32>, vector<8x32xf32>, vector<8x8xf32> -> vector<8x8xf32>
    %cst_83 = arith.constant 0.176776692 : f32
    %103 = vector.broadcast %cst_83 : f32 to vector<8x8xf32>
    %104 = arith.mulf %102, %103 : vector<8x8xf32>
    %cst_84 = arith.constant dense<0.000000e+00> : vector<3x8xf32>
    %105 = tpu.matmul %50, %97, %cst_84 {dimension_numbers = #tpu.dot_dimension_numbers<[1], [1], [0], [0], [0, 0, 1, 0], [], []>} : vector<3x32xf32>, vector<8x32xf32>, vector<3x8xf32> -> vector<3x8xf32>
    %106 = vector.broadcast %51 : vector<3x1xf32> to vector<3x8xf32>
    %107 = arith.addf %105, %106 : vector<3x8xf32>
    %cst_85 = arith.constant dense<0.000000e+00> : vector<8x8xf32>
    %108 = tpu.matmul %99, %97, %cst_85 {dimension_numbers = #tpu.dot_dimension_numbers<[1], [1], [0], [0], [0, 0, 1, 0], [], []>} : vector<8x32xf32>, vector<8x32xf32>, vector<8x8xf32> -> vector<8x8xf32>
    %c1_86 = arith.constant 1 : index
    %c0_87 = arith.constant 0 : index
    %c0_88 = arith.constant 0 : index
    %c0_89 = arith.constant 0 : index
    %109 = vector.load %arg20[%c1_86, %c0_87, %c0_88, %c0_89] : memref<2x2x8x8xf32, #tpu.memory_space<vmem>>, vector<1x1x8x8xf32>
    %110 = vector.shape_cast %109 : vector<1x1x8x8xf32> to vector<8x8xf32>
    %111 = vector.shape_cast %104 : vector<8x8xf32> to vector<1x1x8x8xf32>
    tpu.vector_store %arg20[%c1_86, %c0_87, %c0_88, %c0_89], %111 {strides = array<i32>} : memref<2x2x8x8xf32, #tpu.memory_space<vmem>>, vector<1x1x8x8xf32>,
    %c1_90 = arith.constant 1 : index
    %c0_91 = arith.constant 0 : index
    %c0_92 = arith.constant 0 : index
    %c0_93 = arith.constant 0 : index
    %112 = vector.load %arg21[%c1_90, %c0_91, %c0_92, %c0_93] : memref<2x2x3x8xf32, #tpu.memory_space<vmem>>, vector<1x1x3x8xf32>
    %113 = vector.shape_cast %112 : vector<1x1x3x8xf32> to vector<3x8xf32>
    %114 = vector.shape_cast %107 : vector<3x8xf32> to vector<1x1x3x8xf32>
    tpu.vector_store %arg21[%c1_90, %c0_91, %c0_92, %c0_93], %114 {strides = array<i32>} : memref<2x2x3x8xf32, #tpu.memory_space<vmem>>, vector<1x1x3x8xf32>,
    %c1_94 = arith.constant 1 : index
    %c0_95 = arith.constant 0 : index
    %c0_96 = arith.constant 0 : index
    %c0_97 = arith.constant 0 : index
    %115 = vector.load %arg22[%c1_94, %c0_95, %c0_96, %c0_97] : memref<2x2x8x8xf32, #tpu.memory_space<vmem>>, vector<1x1x8x8xf32>
    %116 = vector.shape_cast %115 : vector<1x1x8x8xf32> to vector<8x8xf32>
    %117 = vector.shape_cast %108 : vector<8x8xf32> to vector<1x1x8x8xf32>
    tpu.vector_store %arg22[%c1_94, %c0_95, %c0_96, %c0_97], %117 {strides = array<i32>} : memref<2x2x8x8xf32, #tpu.memory_space<vmem>>, vector<1x1x8x8xf32>,
    %118 = vector.extract_strided_slice %47 {offsets = [1, 1, 0, 0], sizes = [1, 1, 8, 32], strides = [1, 1, 1, 1]} : vector<2x2x8x32xf32> to vector<1x1x8x32xf32>
    %119 = vector.shape_cast %118 : vector<1x1x8x32xf32> to vector<8x32xf32>
    %120 = vector.extract_strided_slice %48 {offsets = [1, 1, 0, 0], sizes = [1, 1, 8, 32], strides = [1, 1, 1, 1]} : vector<2x2x8x32xf32> to vector<1x1x8x32xf32>
    %121 = vector.shape_cast %120 : vector<1x1x8x32xf32> to vector<8x32xf32>
    %122 = vector.extract_strided_slice %13 {offsets = [1, 0, 0], sizes = [1, 8, 32], strides = [1, 1, 1]} : vector<2x8x32xf32> to vector<1x8x32xf32>
    %123 = vector.shape_cast %122 : vector<1x8x32xf32> to vector<8x32xf32>
    %cst_98 = arith.constant dense<0.000000e+00> : vector<8x8xf32>
    %124 = tpu.matmul %123, %119, %cst_98 {dimension_numbers = #tpu.dot_dimension_numbers<[1], [1], [0], [0], [0, 0, 1, 0], [], []>} : vector<8x32xf32>, vector<8x32xf32>, vector<8x8xf32> -> vector<8x8xf32>
    %cst_99 = arith.constant 0.176776692 : f32
    %125 = vector.broadcast %cst_99 : f32 to vector<8x8xf32>
    %126 = arith.mulf %124, %125 : vector<8x8xf32>
    %cst_100 = arith.constant dense<0.000000e+00> : vector<3x8xf32>
    %127 = tpu.matmul %50, %119, %cst_100 {dimension_numbers = #tpu.dot_dimension_numbers<[1], [1], [0], [0], [0, 0, 1, 0], [], []>} : vector<3x32xf32>, vector<8x32xf32>, vector<3x8xf32> -> vector<3x8xf32>
    %128 = vector.broadcast %51 : vector<3x1xf32> to vector<3x8xf32>
    %129 = arith.addf %127, %128 : vector<3x8xf32>
    %cst_101 = arith.constant dense<0.000000e+00> : vector<8x8xf32>
    %130 = tpu.matmul %121, %119, %cst_101 {dimension_numbers = #tpu.dot_dimension_numbers<[1], [1], [0], [0], [0, 0, 1, 0], [], []>} : vector<8x32xf32>, vector<8x32xf32>, vector<8x8xf32> -> vector<8x8xf32>
    %c1_102 = arith.constant 1 : index
    %c1_103 = arith.constant 1 : index
    %c0_104 = arith.constant 0 : index
    %c0_105 = arith.constant 0 : index
    %131 = vector.load %arg20[%c1_102, %c1_103, %c0_104, %c0_105] : memref<2x2x8x8xf32, #tpu.memory_space<vmem>>, vector<1x1x8x8xf32>
    %132 = vector.shape_cast %131 : vector<1x1x8x8xf32> to vector<8x8xf32>
    %133 = vector.shape_cast %126 : vector<8x8xf32> to vector<1x1x8x8xf32>
    tpu.vector_store %arg20[%c1_102, %c1_103, %c0_104, %c0_105], %133 {strides = array<i32>} : memref<2x2x8x8xf32, #tpu.memory_space<vmem>>, vector<1x1x8x8xf32>,
    %c1_106 = arith.constant 1 : index
    %c1_107 = arith.constant 1 : index
    %c0_108 = arith.constant 0 : index
    %c0_109 = arith.constant 0 : index
    %134 = vector.load %arg21[%c1_106, %c1_107, %c0_108, %c0_109] : memref<2x2x3x8xf32, #tpu.memory_space<vmem>>, vector<1x1x3x8xf32>
    %135 = vector.shape_cast %134 : vector<1x1x3x8xf32> to vector<3x8xf32>
    %136 = vector.shape_cast %129 : vector<3x8xf32> to vector<1x1x3x8xf32>
    tpu.vector_store %arg21[%c1_106, %c1_107, %c0_108, %c0_109], %136 {strides = array<i32>} : memref<2x2x3x8xf32, #tpu.memory_space<vmem>>, vector<1x1x3x8xf32>,
    %c1_110 = arith.constant 1 : index
    %c1_111 = arith.constant 1 : index
    %c0_112 = arith.constant 0 : index
    %c0_113 = arith.constant 0 : index
    %137 = vector.load %arg22[%c1_110, %c1_111, %c0_112, %c0_113] : memref<2x2x8x8xf32, #tpu.memory_space<vmem>>, vector<1x1x8x8xf32>
    %138 = vector.shape_cast %137 : vector<1x1x8x8xf32> to vector<8x8xf32>
    %139 = vector.shape_cast %130 : vector<8x8xf32> to vector<1x1x8x8xf32>
    tpu.vector_store %arg22[%c1_110, %c1_111, %c0_112, %c0_113], %139 {strides = array<i32>} : memref<2x2x8x8xf32, #tpu.memory_space<vmem>>, vector<1x1x8x8xf32>,
    return
  }
  func.func @transform_0(%arg0: i32) -> (i32, i32) {
    %c0_i32 = arith.constant 0 : i32
    %c0_i32_0 = arith.constant 0 : i32
    %c0_i32_1 = arith.constant 0 : i32
    return %c0_i32, %c0_i32_0 : i32, i32
  }
  func.func @transform_1(%arg0: i32) -> (i32, i32, i32) {
    %c0_i32 = arith.constant 0 : i32
    %c0_i32_0 = arith.constant 0 : i32
    %c0_i32_1 = arith.constant 0 : i32
    return %arg0, %c0_i32, %c0_i32_0 : i32, i32, i32
  }
  func.func @transform_2(%arg0: i32) -> (i32, i32, i32) {
    %c0_i32 = arith.constant 0 : i32
    %c0_i32_0 = arith.constant 0 : i32
    %c0_i32_1 = arith.constant 0 : i32
    return %arg0, %c0_i32, %c0_i32_0 : i32, i32, i32
  }
  func.func @transform_3(%arg0: i32) -> (i32, i32, i32) {
    %c0_i32 = arith.constant 0 : i32
    %c0_i32_0 = arith.constant 0 : i32
    %c0_i32_1 = arith.constant 0 : i32
    return %arg0, %c0_i32, %c0_i32_0 : i32, i32, i32
  }
  func.func @transform_4(%arg0: i32) -> (i32, i32, i32) {
    %c0_i32 = arith.constant 0 : i32
    %c0_i32_0 = arith.constant 0 : i32
    %c0_i32_1 = arith.constant 0 : i32
    return %arg0, %c0_i32, %c0_i32_0 : i32, i32, i32
  }
  func.func @transform_5(%arg0: i32) -> (i32, i32) {
    %c0_i32 = arith.constant 0 : i32
    %c0_i32_0 = arith.constant 0 : i32
    %c0_i32_1 = arith.constant 0 : i32
    return %c0_i32, %c0_i32_0 : i32, i32
  }
  func.func @transform_6(%arg0: i32) -> (i32, i32) {
    %c0_i32 = arith.constant 0 : i32
    %c0_i32_0 = arith.constant 0 : i32
    %c0_i32_1 = arith.constant 0 : i32
    return %c0_i32, %c0_i32_0 : i32, i32
  }
  func.func @transform_7(%arg0: i32) -> (i32, i32) {
    %c0_i32 = arith.constant 0 : i32
    %c0_i32_0 = arith.constant 0 : i32
    %c0_i32_1 = arith.constant 0 : i32
    return %c0_i32, %c0_i32_0 : i32, i32
  }
  func.func @transform_8(%arg0: i32) -> (i32, i32) {
    %c0_i32 = arith.constant 0 : i32
    %c0_i32_0 = arith.constant 0 : i32
    %c0_i32_1 = arith.constant 0 : i32
    return %c0_i32, %c0_i32_0 : i32, i32
  }
  func.func @transform_9(%arg0: i32) -> (i32, i32) {
    %c0_i32 = arith.constant 0 : i32
    %c0_i32_0 = arith.constant 0 : i32
    %c0_i32_1 = arith.constant 0 : i32
    return %c0_i32, %c0_i32_0 : i32, i32
  }
  func.func @transform_10(%arg0: i32) -> (i32, i32) {
    %c0_i32 = arith.constant 0 : i32
    %c0_i32_0 = arith.constant 0 : i32
    %c0_i32_1 = arith.constant 0 : i32
    return %c0_i32, %c0_i32_0 : i32, i32
  }
  func.func @transform_11(%arg0: i32) -> (i32, i32) {
    %c0_i32 = arith.constant 0 : i32
    %c0_i32_0 = arith.constant 0 : i32
    %c0_i32_1 = arith.constant 0 : i32
    return %c0_i32, %c0_i32_0 : i32, i32
  }
  func.func @transform_12(%arg0: i32) -> (i32, i32) {
    %c0_i32 = arith.constant 0 : i32
    %c0_i32_0 = arith.constant 0 : i32
    %c0_i32_1 = arith.constant 0 : i32
    return %c0_i32, %c0_i32_0 : i32, i32
  }
  func.func @transform_13(%arg0: i32) -> (i32, i32) {
    %c0_i32 = arith.constant 0 : i32
    %c0_i32_0 = arith.constant 0 : i32
    %c0_i32_1 = arith.constant 0 : i32
    return %c0_i32, %c0_i32_0 : i32, i32
  }
  func.func @transform_14(%arg0: i32) -> (i32, i32) {
    %c0_i32 = arith.constant 0 : i32
    %c0_i32_0 = arith.constant 0 : i32
    %c0_i32_1 = arith.constant 0 : i32
    return %c0_i32, %c0_i32_0 : i32, i32
  }
  func.func @transform_15(%arg0: i32) -> (i32, i32) {
    %c0_i32 = arith.constant 0 : i32
    %c0_i32_0 = arith.constant 0 : i32
    %c0_i32_1 = arith.constant 0 : i32
    return %c0_i32, %c0_i32_0 : i32, i32
  }
  func.func @transform_16(%arg0: i32) -> (i32, i32, i32) {
    %c0_i32 = arith.constant 0 : i32
    %c0_i32_0 = arith.constant 0 : i32
    %c0_i32_1 = arith.constant 0 : i32
    return %arg0, %c0_i32, %c0_i32_0 : i32, i32, i32
  }
  func.func @transform_17(%arg0: i32) -> (i32, i32, i32) {
    %c0_i32 = arith.constant 0 : i32
    %c0_i32_0 = arith.constant 0 : i32
    %c0_i32_1 = arith.constant 0 : i32
    return %arg0, %c0_i32, %c0_i32_0 : i32, i32, i32
  }
  func.func @transform_18(%arg0: i32) -> (i32, i32, i32, i32) {
    %c0_i32 = arith.constant 0 : i32
    %c0_i32_0 = arith.constant 0 : i32
    %c0_i32_1 = arith.constant 0 : i32
    %c0_i32_2 = arith.constant 0 : i32
    return %c0_i32, %arg0, %c0_i32_0, %c0_i32_1 : i32, i32, i32, i32
  }
  func.func @transform_19(%arg0: i32) -> (i32, i32, i32, i32) {
    %c0_i32 = arith.constant 0 : i32
    %c0_i32_0 = arith.constant 0 : i32
    %c0_i32_1 = arith.constant 0 : i32
    %c0_i32_2 = arith.constant 0 : i32
    return %c0_i32, %arg0, %c0_i32_0, %c0_i32_1 : i32, i32, i32, i32
  }
  func.func @transform_20(%arg0: i32) -> (i32, i32, i32, i32) {
    %c0_i32 = arith.constant 0 : i32
    %c0_i32_0 = arith.constant 0 : i32
    %c0_i32_1 = arith.constant 0 : i32
    %c0_i32_2 = arith.constant 0 : i32
    return %c0_i32, %arg0, %c0_i32_0, %c0_i32_1 : i32, i32, i32, i32
  }
  func.func @transform_21(%arg0: i32) -> (i32, i32, i32, i32) {
    %c0_i32 = arith.constant 0 : i32
    %c0_i32_0 = arith.constant 0 : i32
    %c0_i32_1 = arith.constant 0 : i32
    %c0_i32_2 = arith.constant 0 : i32
    return %c0_i32, %arg0, %c0_i32_0, %c0_i32_1 : i32, i32, i32, i32
  }
}

</mosaic_0001>

<llo_original>
// kernel: caem_forward.1
$region0: #{caem_forward.1}
  #allocation0 [shape = 'u32[]', space=smem, size = 0x4, offset = 0x4, fixed_abs, tag = 'smem constant byte address 0x4 - core index']
  #allocation1 [shape = 'u32[144,128]{1,0:T(1,128)}', space=vmem, size = 0x12000, scoped, tag = 'internal scratch']
  %s0 = inlined_call_operand.vmem [shape: f32[32,64], index: 0, kind: input, shape index: {}]
  %s1 = inlined_call_operand.hbm [shape: f32[2,16,64], index: 1, kind: input, shape index: {}]
  %s2 = inlined_call_operand.hbm [shape: f32[2,16,64], index: 2, kind: input, shape index: {}]
  %s3 = inlined_call_operand.hbm [shape: f32[2,8,48], index: 3, kind: input, shape index: {}]
  %s4 = inlined_call_operand.vmem [shape: f32[2,8,2], index: 4, kind: input, shape index: {}]
  %s5 = inlined_call_operand.vmem [shape: f32[64,32], index: 5, kind: input, shape index: {}]
  %s6 = inlined_call_operand.vmem [shape: f32[1,32], index: 6, kind: input, shape index: {}]
  %s7 = inlined_call_operand.vmem [shape: f32[48,32], index: 7, kind: input, shape index: {}]
  %s8 = inlined_call_operand.vmem [shape: f32[1,32], index: 8, kind: input, shape index: {}]
  %s9 = inlined_call_operand.hbm [shape: f32[32,32], index: 9, kind: input, shape index: {}]
  %s10 = inlined_call_operand.vmem [shape: f32[1,32], index: 10, kind: input, shape index: {}]
  %s11 = inlined_call_operand.hbm [shape: f32[32,16], index: 11, kind: input, shape index: {}]
  %s12 = inlined_call_operand.vmem [shape: f32[1,16], index: 12, kind: input, shape index: {}]
  %s13 = inlined_call_operand.vmem [shape: f32[3,32], index: 13, kind: input, shape index: {}]
  %s14 = inlined_call_operand.vmem [shape: f32[3,1], index: 14, kind: input, shape index: {}]
  %s15 = inlined_call_operand.hbm [shape: f32[32,32], index: 15, kind: input, shape index: {}]
  %s16 = inlined_call_operand.vmem [shape: f32[2,8,32], index: 16, kind: output, shape index: {0}]
  %s17 = inlined_call_operand.vmem [shape: f32[2,8,16], index: 17, kind: output, shape index: {1}]
  %s18 = inlined_call_operand.vmem [shape: f32[2,2,8,32], index: 18, kind: output, shape index: {2}]
  %s19 = inlined_call_operand.vmem [shape: f32[2,2,8,8], index: 19, kind: output, shape index: {3}]
  %s20 = inlined_call_operand.vmem [shape: f32[2,2,3,8], index: 20, kind: output, shape index: {4}]
  %s21 = inlined_call_operand.vmem [shape: f32[2,2,8,8], index: 21, kind: output, shape index: {5}]
  %22 = xla_tuple %s16, %s17, %s18, %s19, %s20, %s21
  %s23 = sld [smem:[#allocation0]]
  $region138: #{caem_forward.1} parent=0
    _
  %s25 = ssub.s32 1, %s23
  %s26 = scalar_select 0, %s25, %s23
  $region1: #{caem_forward.1} parent=0
    #allocation2 [shape = 'u8[16384]{0}', space=vmem, size = 0x4000, scoped, tag = 'input window, operand 1, single buffered']
    #allocation3 [shape = 's32[1]{0}', space=sflag, size = 0x4, scoped, tag = 'scoped memory for caem_forward.1']
    #allocation4 [shape = 'u8[16384]{0}', space=vmem, size = 0x4000, scoped, tag = 'input window, operand 2, single buffered']
    #allocation5 [shape = 's32[1]{0}', space=sflag, size = 0x4, scoped, tag = 'scoped memory for caem_forward.1']
    #allocation6 [shape = 'u8[8192]{0}', space=vmem, size = 0x2000, scoped, tag = 'input window, operand 3, single buffered']
    #allocation7 [shape = 'u8[16384]{0}', space=vmem, size = 0x4000, scoped, tag = 'input window, operand 9, single buffered']
    #allocation8 [shape = 's32[1]{0}', space=sflag, size = 0x4, scoped, tag = 'scoped memory for caem_forward.1']
    #allocation9 [shape = 'u8[16384]{0}', space=vmem, size = 0x4000, scoped, tag = 'input window, operand 11, single buffered']
    #allocation10 [shape = 'u8[16384]{0}', space=vmem, size = 0x4000, scoped, tag = 'input window, operand 15, single buffered']
    #allocation11 [shape = 's32[1]{0}', space=sflag, size = 0x4, scoped, tag = 'scoped memory for caem_forward.1']
    %27 = vsyncpa [#allocation3], 0
    %28 = vsyncpa [#allocation5], 0
    %29 = vsyncpa [#allocation8], 0
    %30 = vsyncpa [#allocation11], 0
    // Predicated region
    $region2: #{caem_forward.1} parent=1 // pred_check
      _
    $region3: #{caem_forward.1} parent=1 // pred_check_branch
      %32 = sbr.rel (0) target = $region5
    $region4: #{caem_forward.1} parent=1 // pred_region
      _
    $region5: #{caem_forward.1} parent=1 // pred_fallthru
      _
    // Predicated region
    $region6: #{caem_forward.1} parent=1 // pred_check
      _
    $region7: #{caem_forward.1} parent=1 // pred_check_branch
      %34 = sbr.rel (0) target = $region9
    $region8: #{caem_forward.1} parent=1 // pred_region
      %s36 = ssub.s32 512, 512
      %37 = vsyncadd [#allocation3], %s36
      %s38 = sshll.u32 [#allocation2], 4
      %s39 = int_to_ptr.vmem [resolvable:$true] %s38
      %44 = dma.hbm_to_vmem [thread:$0]  %s1, 512, %s39, [#allocation3], 128, 128, 8
    $region9: #{caem_forward.1} parent=1 // pred_fallthru
      _
    // Predicated region
    $region10: #{caem_forward.1} parent=1 // pred_check
      _
    $region11: #{caem_forward.1} parent=1 // pred_check_branch
      %46 = sbr.rel (0) target = $region13
    $region12: #{caem_forward.1} parent=1 // pred_region
      %s48 = ssub.s32 512, 512
      %49 = vsyncadd [#allocation5], %s48
      %s50 = sshll.u32 [#allocation4], 4
      %s51 = int_to_ptr.vmem [resolvable:$true] %s50
      %56 = dma.hbm_to_vmem [thread:$0]  %s2, 512, %s51, [#allocation5], 128, 128, 8
    $region13: #{caem_forward.1} parent=1 // pred_fallthru
      _
    // Predicated region
    $region14: #{caem_forward.1} parent=1 // pred_check
      _
    $region15: #{caem_forward.1} parent=1 // pred_check_branch
      %58 = sbr.rel (0) target = $region17
    $region16: #{caem_forward.1} parent=1 // pred_region
      %s60 = ssub.s32 256, 256
      %61 = vsyncadd [#allocation5], %s60
      %s62 = sshll.u32 [#allocation6], 4
      %s63 = int_to_ptr.vmem [resolvable:$true] %s62
      %68 = dma.hbm_to_vmem [thread:$0]  %s3, 256, %s63, [#allocation5], 128, 128, 8
    $region17: #{caem_forward.1} parent=1 // pred_fallthru
      _
    // Predicated region
    $region18: #{caem_forward.1} parent=1 // pred_check
      _
    $region19: #{caem_forward.1} parent=1 // pred_check_branch
      %70 = sbr.rel (0) target = $region21
    $region20: #{caem_forward.1} parent=1 // pred_region
      _
    $region21: #{caem_forward.1} parent=1 // pred_fallthru
      _
    // Predicated region
    $region22: #{caem_forward.1} parent=1 // pred_check
      _
    $region23: #{caem_forward.1} parent=1 // pred_check_branch
      %72 = sbr.rel (0) target = $region25
    $region24: #{caem_forward.1} parent=1 // pred_region
      _
    $region25: #{caem_forward.1} parent=1 // pred_fallthru
      _
    // Predicated region
    $region26: #{caem_forward.1} parent=1 // pred_check
      _
    $region27: #{caem_forward.1} parent=1 // pred_check_branch
      %74 = sbr.rel (0) target = $region29
    $region28: #{caem_forward.1} parent=1 // pred_region
      _
    $region29: #{caem_forward.1} parent=1 // pred_fallthru
      _
    // Predicated region
    $region30: #{caem_forward.1} parent=1 // pred_check
      _
    $region31: #{caem_forward.1} parent=1 // pred_check_branch
      %76 = sbr.rel (0) target = $region33
    $region32: #{caem_forward.1} parent=1 // pred_region
      _
    $region33: #{caem_forward.1} parent=1 // pred_fallthru
      _
    // Predicated region
    $region34: #{caem_forward.1} parent=1 // pred_check
      _
    $region35: #{caem_forward.1} parent=1 // pred_check_branch
      %78 = sbr.rel (0) target = $region37
    $region36: #{caem_forward.1} parent=1 // pred_region
      _
    $region37: #{caem_forward.1} parent=1 // pred_fallthru
      _
    // Predicated region
    $region38: #{caem_forward.1} parent=1 // pred_check
      _
    $region39: #{caem_forward.1} parent=1 // pred_check_branch
      %80 = sbr.rel (0) target = $region41
    $region40: #{caem_forward.1} parent=1 // pred_region
      %s82 = ssub.s32 512, 512
      %83 = vsyncadd [#allocation8], %s82
      %s84 = sshll.u32 [#allocation7], 4
      %s85 = int_to_ptr.vmem [resolvable:$true] %s84
      %90 = dma.hbm_to_vmem [thread:$0]  %s9, 512, %s85, [#allocation8], 128, 128, 8
    $region41: #{caem_forward.1} parent=1 // pred_fallthru
      _
    // Predicated region
    $region42: #{caem_forward.1} parent=1 // pred_check
      _
    $region43: #{caem_forward.1} parent=1 // pred_check_branch
      %92 = sbr.rel (0) target = $region45
    $region44: #{caem_forward.1} parent=1 // pred_region
      _
    $region45: #{caem_forward.1} parent=1 // pred_fallthru
      _
    // Predicated region
    $region46: #{caem_forward.1} parent=1 // pred_check
      _
    $region47: #{caem_forward.1} parent=1 // pred_check_branch
      %94 = sbr.rel (0) target = $region49
    $region48: #{caem_forward.1} parent=1 // pred_region
      %s96 = ssub.s32 512, 512
      %97 = vsyncadd [#allocation8], %s96
      %s98 = sshll.u32 [#allocation9], 4
      %s99 = int_to_ptr.vmem [resolvable:$true] %s98
      %104 = dma.hbm_to_vmem [thread:$0]  %s11, 512, %s99, [#allocation8], 128, 128, 8
    $region49: #{caem_forward.1} parent=1 // pred_fallthru
      _
    // Predicated region
    $region50: #{caem_forward.1} parent=1 // pred_check
      _
    $region51: #{caem_forward.1} parent=1 // pred_check_branch
      %106 = sbr.rel (0) target = $region53
    $region52: #{caem_forward.1} parent=1 // pred_region
      _
    $region53: #{caem_forward.1} parent=1 // pred_fallthru
      _
    // Predicated region
    $region54: #{caem_forward.1} parent=1 // pred_check
      _
    $region55: #{caem_forward.1} parent=1 // pred_check_branch
      %108 = sbr.rel (0) target = $region57
    $region56: #{caem_forward.1} parent=1 // pred_region
      _
    $region57: #{caem_forward.1} parent=1 // pred_fallthru
      _
    // Predicated region
    $region58: #{caem_forward.1} parent=1 // pred_check
      _
    $region59: #{caem_forward.1} parent=1 // pred_check_branch
      %110 = sbr.rel (0) target = $region61
    $region60: #{caem_forward.1} parent=1 // pred_region
      _
    $region61: #{caem_forward.1} parent=1 // pred_fallthru
      _
    // Predicated region
    $region62: #{caem_forward.1} parent=1 // pred_check
      _
    $region63: #{caem_forward.1} parent=1 // pred_check_branch
      %112 = sbr.rel (0) target = $region65
    $region64: #{caem_forward.1} parent=1 // pred_region
      %s114 = ssub.s32 512, 512
      %115 = vsyncadd [#allocation11], %s114
      %s116 = sshll.u32 [#allocation10], 4
      %s117 = int_to_ptr.vmem [resolvable:$true] %s116
      %122 = dma.hbm_to_vmem [thread:$0]  %s15, 512, %s117, [#allocation11], 128, 128, 8
    $region65: #{caem_forward.1} parent=1 // pred_fallthru
      _
    // Predicated region
    $region66: #{caem_forward.1} parent=1 // pred_check
      _
    $region67: #{caem_forward.1} parent=1 // pred_check_branch
      %124 = sbr.rel (0) target = $region69
    $region68: #{caem_forward.1} parent=1 // pred_region
      %125 = dma.done [#allocation3], 512
    $region69: #{caem_forward.1} parent=1 // pred_fallthru
      _
    // Predicated region
    $region70: #{caem_forward.1} parent=1 // pred_check
      _
    $region71: #{caem_forward.1} parent=1 // pred_check_branch
      %127 = sbr.rel (0) target = $region73
    $region72: #{caem_forward.1} parent=1 // pred_region
      %128 = dma.done [#allocation5], 512
    $region73: #{caem_forward.1} parent=1 // pred_fallthru
      _
    // Predicated region
    $region74: #{caem_forward.1} parent=1 // pred_check
      _
    $region75: #{caem_forward.1} parent=1 // pred_check_branch
      %130 = sbr.rel (0) target = $region77
    $region76: #{caem_forward.1} parent=1 // pred_region
      %131 = dma.done [#allocation5], 256
    $region77: #{caem_forward.1} parent=1 // pred_fallthru
      _
    // Predicated region
    $region78: #{caem_forward.1} parent=1 // pred_check
      _
    $region79: #{caem_forward.1} parent=1 // pred_check_branch
      %133 = sbr.rel (0) target = $region81
    $region80: #{caem_forward.1} parent=1 // pred_region
      %134 = dma.done [#allocation8], 512
    $region81: #{caem_forward.1} parent=1 // pred_fallthru
      _
    // Predicated region
    $region82: #{caem_forward.1} parent=1 // pred_check
      _
    $region83: #{caem_forward.1} parent=1 // pred_check_branch
      %136 = sbr.rel (0) target = $region85
    $region84: #{caem_forward.1} parent=1 // pred_region
      %137 = dma.done [#allocation8], 512
    $region85: #{caem_forward.1} parent=1 // pred_fallthru
      _
    // Predicated region
    $region86: #{caem_forward.1} parent=1 // pred_check
      _
    $region87: #{caem_forward.1} parent=1 // pred_check_branch
      %139 = sbr.rel (0) target = $region89
    $region88: #{caem_forward.1} parent=1 // pred_region
      %140 = dma.done [#allocation11], 512
    $region89: #{caem_forward.1} parent=1 // pred_fallthru
      _
    %v141 = vld [vmem:[#allocation6] sm:$0xff]
    %v142 = vld [vmem:[#allocation6 + $0x8] sm:$0xff]
    %v143 = vld [vmem:[%s7] sm:$0xff]
    %v144 = vld [vmem:[%s7 + $0x8] sm:$0xff]
    %v145 = vld [vmem:[%s7 + $0x10] sm:$0xff]
    %v146 = vld [vmem:[%s7 + $0x18] sm:$0xff]
    %v147 = vld [vmem:[%s7 + $0x20] sm:$0xff]
    %v148 = vld [vmem:[%s7 + $0x28] sm:$0xff]
    %v149 = vld [vmem:[%s8] sm:$0x1]
    %v151 = vlaneseq
    %v152 = vshrl.u32 %v151, 7
    %v153 = vsub.s32 0, %v152
    %v154 = vrot.slane %v149, %v153
    %vm156 = vcmask 392192
    %v158 = vsel %vm156, %v141, 0
    %v161 = vsel %vm156, %v142, 0
    %163 = vmatprep.subr.mxu0 0.0
    %164 = vmatpush1.msra.mxu0 %v143
    %165 = vmatprep.subr.mxu0 0.0
    %166 = vmatpush1.msra.mxu0 %v144
    %167 = vmatprep.subr.mxu0 0.0
    %168 = vmatpush1.msra.mxu0 %v145
    %169 = vmatprep.subr.mxu0 0.0
    %170 = vmatpush1.msra.mxu0 %v146
    %171 = vmatprep.subr.mxu0 0.0
    %172 = vmatpush1.msra.mxu0 %v147
    %173 = vmatprep.subr.mxu0 0.0
    %174 = vmatpush1.msra.mxu0 %v148
    %175 = vmatprep.subr.mxu0 0.0
    %176 = vmatpush1.msra.mxu0 0.0
    %177 = vmatprep.subr.mxu0 0.0
    %178 = vmatpush1.msra.mxu0 0.0
    %179 = vmatprep.subr.mxu0 0.0
    %180 = vmatpush1.msra.mxu0 0.0
    %181 = vmatprep.subr.mxu0 0.0
    %182 = vmatpush1.msra.mxu0 0.0
    %183 = vmatprep.subr.mxu0 0.0
    %184 = vmatpush1.msra.mxu0 0.0
    %185 = vmatprep.subr.mxu0 0.0
    %186 = vmatpush1.msra.mxu0 0.0
    %187 = vmatprep.subr.mxu0 0.0
    %188 = vmatpush1.msra.mxu0 0.0
    %189 = vmatprep.subr.mxu0 0.0
    %190 = vmatpush1.msra.mxu0 0.0
    %191 = vmatprep.subr.mxu0 0.0
    %192 = vmatpush1.msra.mxu0 0.0
    %193 = vmatprep.subr.mxu0 0.0
    %194 = vmatpush1.msra.mxu0 0.0
    %195 = vmatprep.subr.mxu0 0.0
    %196 = vmatpush1.msra.mxu0 0.0
    %197 = vmatprep.subr.mxu0 0.0
    %198 = vmatpush1.msra.mxu0 0.0
    %199 = vmatprep.subr.mxu0 0.0
    %200 = vmatpush1.msra.mxu0 0.0
    %201 = vmatprep.subr.mxu0 0.0
    %202 = vmatpush1.msra.mxu0 0.0
    %203 = vmatprep.subr.mxu0 0.0
    %204 = vmatpush1.msra.mxu0 0.0
    %205 = vmatprep.subr.mxu0 0.0
    %206 = vmatpush1.msra.mxu0 0.0
    %207 = vmatprep.subr.mxu0 0.0
    %208 = vmatpush1.msra.mxu0 0.0
    %209 = vmatprep.subr.mxu0 0.0
    %210 = vmatpush1.msra.mxu0 0.0
    %211 = vmatprep.subr.mxu0 0.0
    %212 = vmatpush1.msra.mxu0 0.0
    %213 = vmatprep.subr.mxu0 0.0
    %214 = vmatpush1.msra.mxu0 0.0
    %215 = vmatprep.subr.mxu0 0.0
    %216 = vmatpush1.msra.mxu0 0.0
    %217 = vmatprep.subr.mxu0 0.0
    %218 = vmatpush1.msra.mxu0 0.0
    %219 = vmatprep.subr.mxu0 0.0
    %220 = vmatpush1.msra.mxu0 0.0
    %221 = vmatprep.subr.mxu0 0.0
    %222 = vmatpush1.msra.mxu0 0.0
    %223 = vmatprep.subr.mxu0 0.0
    %224 = vmatpush1.msra.mxu0 0.0
    %225 = vmatprep.subr.mxu0 0.0
    %226 = vmatpush1.msra.mxu0 0.0
    %227 = vmatprep.mubr.f32.mxu0 0.0
    %228 = vmatmul.mubr.f32.gmra.mrb[0].mxu0 %v158
    %v229 = vpop.f32.mrb[0].mxu0
    %v230 = vadd.f32 %v154, %v229
    %v231 = vpop.f32.mrb[0].mxu0
    %232 = vmatprep.mubr.f32.mxu0 0.0
    %233 = vmatmul.mubr.f32.gmra.mrb[0].mxu0 %v161
    %v234 = vpop.f32.mrb[0].mxu0
    %v235 = vadd.f32 %v154, %v234
    %v236 = vpop.f32.mrb[0].mxu0
    %237 = vdwg.mxu0
    %v238 = vtanh.pop %v230
    %v239 = vtanh.pop %v235
    %v240 = vld [vmem:[%s4] sm:$0xff]
    %v241 = vld [vmem:[%s4 + $0x8] sm:$0xff]
    %243 = vset.pattern.permute.xlu0 0
    %244 = vperm.xlu0 %243, %v240
    %v245 = vpop.permute.xlu0 %244
    %248 = vset.pattern.permute.xlu0 0
    %249 = vperm.xlu0 %248, %v241
    %v250 = vpop.permute.xlu0 %249
    %v252 = vmul.f32 %v238, %v245
    %v253 = vmul.f32 %v239, %v250
    %v254 = vld [vmem:[#allocation9] sm:$0xff]
    %v255 = vld [vmem:[#allocation9 + $0x8] sm:$0xff]
    %v256 = vld [vmem:[#allocation9 + $0x10] sm:$0xff]
    %v257 = vld [vmem:[#allocation9 + $0x18] sm:$0xff]
    %v258 = vld [vmem:[%s12] sm:$0x1]
    %v260 = vlaneseq
    %v261 = vshrl.u32 %v260, 7
    %v262 = vsub.s32 0, %v261
    %v263 = vrot.slane %v258, %v262
    %vm265 = vcmask 261120
    %v267 = vsel %vm265, %v252, 0
    %v270 = vsel %vm265, %v253, 0
    %272 = vmatprep.subr.mxu0 0.0
    %273 = vmatpush1.msra.mxu0 %v254
    %274 = vmatprep.subr.mxu0 0.0
    %275 = vmatpush1.msra.mxu0 %v255
    %276 = vmatprep.subr.mxu0 0.0
    %277 = vmatpush1.msra.mxu0 %v256
    %278 = vmatprep.subr.mxu0 0.0
    %279 = vmatpush1.msra.mxu0 %v257
    %280 = vmatprep.subr.mxu0 0.0
    %281 = vmatpush1.msra.mxu0 0.0
    %282 = vmatprep.subr.mxu0 0.0
    %283 = vmatpush1.msra.mxu0 0.0
    %284 = vmatprep.subr.mxu0 0.0
    %285 = vmatpush1.msra.mxu0 0.0
    %286 = vmatprep.subr.mxu0 0.0
    %287 = vmatpush1.msra.mxu0 0.0
    %288 = vmatprep.subr.mxu0 0.0
    %289 = vmatpush1.msra.mxu0 0.0
    %290 = vmatprep.subr.mxu0 0.0
    %291 = vmatpush1.msra.mxu0 0.0
    %292 = vmatprep.subr.mxu0 0.0
    %293 = vmatpush1.msra.mxu0 0.0
    %294 = vmatprep.subr.mxu0 0.0
    %295 = vmatpush1.msra.mxu0 0.0
    %296 = vmatprep.subr.mxu0 0.0
    %297 = vmatpush1.msra.mxu0 0.0
    %298 = vmatprep.subr.mxu0 0.0
    %299 = vmatpush1.msra.mxu0 0.0
    %300 = vmatprep.subr.mxu0 0.0
    %301 = vmatpush1.msra.mxu0 0.0
    %302 = vmatprep.subr.mxu0 0.0
    %303 = vmatpush1.msra.mxu0 0.0
    %304 = vmatprep.subr.mxu0 0.0
    %305 = vmatpush1.msra.mxu0 0.0
    %306 = vmatprep.subr.mxu0 0.0
    %307 = vmatpush1.msra.mxu0 0.0
    %308 = vmatprep.subr.mxu0 0.0
    %309 = vmatpush1.msra.mxu0 0.0
    %310 = vmatprep.subr.mxu0 0.0
    %311 = vmatpush1.msra.mxu0 0.0
    %312 = vmatprep.subr.mxu0 0.0
    %313 = vmatpush1.msra.mxu0 0.0
    %314 = vmatprep.subr.mxu0 0.0
    %315 = vmatpush1.msra.mxu0 0.0
    %316 = vmatprep.subr.mxu0 0.0
    %317 = vmatpush1.msra.mxu0 0.0
    %318 = vmatprep.subr.mxu0 0.0
    %319 = vmatpush1.msra.mxu0 0.0
    %320 = vmatprep.subr.mxu0 0.0
    %321 = vmatpush1.msra.mxu0 0.0
    %322 = vmatprep.subr.mxu0 0.0
    %323 = vmatpush1.msra.mxu0 0.0
    %324 = vmatprep.subr.mxu0 0.0
    %325 = vmatpush1.msra.mxu0 0.0
    %326 = vmatprep.subr.mxu0 0.0
    %327 = vmatpush1.msra.mxu0 0.0
    %328 = vmatprep.subr.mxu0 0.0
    %329 = vmatpush1.msra.mxu0 0.0
    %330 = vmatprep.subr.mxu0 0.0
    %331 = vmatpush1.msra.mxu0 0.0
    %332 = vmatprep.subr.mxu0 0.0
    %333 = vmatpush1.msra.mxu0 0.0
    %334 = vmatprep.subr.mxu0 0.0
    %335 = vmatpush1.msra.mxu0 0.0
    %336 = vmatprep.mubr.f32.mxu0 0.0
    %337 = vmatmul.mubr.f32.gmra.mrb[0].mxu0 %v267
    %v338 = vpop.f32.mrb[0].mxu0
    %v339 = vadd.f32 %v263, %v338
    %v340 = vpop.f32.mrb[0].mxu0
    %341 = vmatprep.mubr.f32.mxu0 0.0
    %342 = vmatmul.mubr.f32.gmra.mrb[0].mxu0 %v270
    %v343 = vpop.f32.mrb[0].mxu0
    %v344 = vadd.f32 %v263, %v343
    %v345 = vpop.f32.mrb[0].mxu0
    %346 = vdwg.mxu0
    %347 = vset.pattern.permute.xlu0 1
    %348 = vperm.xlu0 %347, %v240
    %v349 = vpop.permute.xlu0 %348
    %351 = vset.pattern.permute.xlu0 1
    %352 = vperm.xlu0 %351, %v241
    %v353 = vpop.permute.xlu0 %352
    %v355 = vmul.f32 %v339, %v349
    %v356 = vmul.f32 %v344, %v353
    %357 = vst.msk [vmem:[%s16] sm:$0xff] %vm265, %v252
    %358 = vst.msk [vmem:[%s16 + $0x8] sm:$0xff] %vm265, %v253
    %vm359 = vcmask 130048
    %360 = vst.msk [vmem:[%s17] sm:$0xff] %vm359, %v355
    %361 = vst.msk [vmem:[%s17 + $0x8] sm:$0xff] %vm359, %v356
    %v362 = vld [vmem:[#allocation2] sm:$0xff]
    %v363 = vld [vmem:[#allocation2 + $0x8] sm:$0xff]
    %v364 = vld [vmem:[#allocation2 + $0x10] sm:$0xff]
    %v365 = vld [vmem:[#allocation2 + $0x18] sm:$0xff]
    %v366 = vld [vmem:[#allocation4] sm:$0xff]
    %v367 = vld [vmem:[#allocation4 + $0x8] sm:$0xff]
    %v368 = vld [vmem:[#allocation4 + $0x10] sm:$0xff]
    %v369 = vld [vmem:[#allocation4 + $0x18] sm:$0xff]
    %v370 = vld [vmem:[%s5] sm:$0xff]
    %v371 = vld [vmem:[%s5 + $0x8] sm:$0xff]
    %v372 = vld [vmem:[%s5 + $0x10] sm:$0xff]
    %v373 = vld [vmem:[%s5 + $0x18] sm:$0xff]
    %v374 = vld [vmem:[%s5 + $0x20] sm:$0xff]
    %v375 = vld [vmem:[%s5 + $0x28] sm:$0xff]
    %v376 = vld [vmem:[%s5 + $0x30] sm:$0xff]
    %v377 = vld [vmem:[%s5 + $0x38] sm:$0xff]
    %v378 = vld [vmem:[%s6] sm:$0x1]
    %v380 = vlaneseq
    %v381 = vshrl.u32 %v380, 7
    %v382 = vsub.s32 0, %v381
    %v383 = vrot.slane %v378, %v382
    %vm385 = vcmask 523264
    %v387 = vsel %vm385, %v362, 0
    %v390 = vsel %vm385, %v363, 0
    %v393 = vsel %vm385, %v364, 0
    %v396 = vsel %vm385, %v365, 0
    %v399 = vsel %vm385, %v366, 0
    %v402 = vsel %vm385, %v367, 0
    %v405 = vsel %vm385, %v368, 0
    %v408 = vsel %vm385, %v369, 0
    %410 = vmatprep.subr.mxu0 0.0
    %411 = vmatpush1.msra.mxu0 %v370
    %412 = vmatprep.subr.mxu0 0.0
    %413 = vmatpush1.msra.mxu0 %v371
    %414 = vmatprep.subr.mxu0 0.0
    %415 = vmatpush1.msra.mxu0 %v372
    %416 = vmatprep.subr.mxu0 0.0
    %417 = vmatpush1.msra.mxu0 %v373
    %418 = vmatprep.subr.mxu0 0.0
    %419 = vmatpush1.msra.mxu0 %v374
    %420 = vmatprep.subr.mxu0 0.0
    %421 = vmatpush1.msra.mxu0 %v375
    %422 = vmatprep.subr.mxu0 0.0
    %423 = vmatpush1.msra.mxu0 %v376
    %424 = vmatprep.subr.mxu0 0.0
    %425 = vmatpush1.msra.mxu0 %v377
    %426 = vmatprep.subr.mxu0 0.0
    %427 = vmatpush1.msra.mxu0 0.0
    %428 = vmatprep.subr.mxu0 0.0
    %429 = vmatpush1.msra.mxu0 0.0
    %430 = vmatprep.subr.mxu0 0.0
    %431 = vmatpush1.msra.mxu0 0.0
    %432 = vmatprep.subr.mxu0 0.0
    %433 = vmatpush1.msra.mxu0 0.0
    %434 = vmatprep.subr.mxu0 0.0
    %435 = vmatpush1.msra.mxu0 0.0
    %436 = vmatprep.subr.mxu0 0.0
    %437 = vmatpush1.msra.mxu0 0.0
    %438 = vmatprep.subr.mxu0 0.0
    %439 = vmatpush1.msra.mxu0 0.0
    %440 = vmatprep.subr.mxu0 0.0
    %441 = vmatpush1.msra.mxu0 0.0
    %442 = vmatprep.subr.mxu0 0.0
    %443 = vmatpush1.msra.mxu0 0.0
    %444 = vmatprep.subr.mxu0 0.0
    %445 = vmatpush1.msra.mxu0 0.0
    %446 = vmatprep.subr.mxu0 0.0
    %447 = vmatpush1.msra.mxu0 0.0
    %448 = vmatprep.subr.mxu0 0.0
    %449 = vmatpush1.msra.mxu0 0.0
    %450 = vmatprep.subr.mxu0 0.0
    %451 = vmatpush1.msra.mxu0 0.0
    %452 = vmatprep.subr.mxu0 0.0
    %453 = vmatpush1.msra.mxu0 0.0
    %454 = vmatprep.subr.mxu0 0.0
    %455 = vmatpush1.msra.mxu0 0.0
    %456 = vmatprep.subr.mxu0 0.0
    %457 = vmatpush1.msra.mxu0 0.0
    %458 = vmatprep.subr.mxu0 0.0
    %459 = vmatpush1.msra.mxu0 0.0
    %460 = vmatprep.subr.mxu0 0.0
    %461 = vmatpush1.msra.mxu0 0.0
    %462 = vmatprep.subr.mxu0 0.0
    %463 = vmatpush1.msra.mxu0 0.0
    %464 = vmatprep.subr.mxu0 0.0
    %465 = vmatpush1.msra.mxu0 0.0
    %466 = vmatprep.subr.mxu0 0.0
    %467 = vmatpush1.msra.mxu0 0.0
    %468 = vmatprep.subr.mxu0 0.0
    %469 = vmatpush1.msra.mxu0 0.0
    %470 = vmatprep.subr.mxu0 0.0
    %471 = vmatpush1.msra.mxu0 0.0
    %472 = vmatprep.subr.mxu0 0.0
    %473 = vmatpush1.msra.mxu0 0.0
    %474 = vmatprep.mubr.f32.mxu0 0.0
    %475 = vmatmul.mubr.f32.gmra.mrb[0].mxu0 %v387
    %v476 = vpop.f32.mrb[0].mxu0
    %v477 = vadd.f32 %v383, %v476
    %v478 = vpop.f32.mrb[0].mxu0
    %479 = vmatprep.mubr.f32.mxu0 0.0
    %480 = vmatmul.mubr.f32.gmra.mrb[0].mxu0 %v390
    %v481 = vpop.f32.mrb[0].mxu0
    %v482 = vadd.f32 %v383, %v481
    %v483 = vpop.f32.mrb[0].mxu0
    %484 = vmatprep.mubr.f32.mxu0 0.0
    %485 = vmatmul.mubr.f32.gmra.mrb[0].mxu0 %v393
    %v486 = vpop.f32.mrb[0].mxu0
    %v487 = vadd.f32 %v383, %v486
    %v488 = vpop.f32.mrb[0].mxu0
    %489 = vmatprep.mubr.f32.mxu0 0.0
    %490 = vmatmul.mubr.f32.gmra.mrb[0].mxu0 %v396
    %v491 = vpop.f32.mrb[0].mxu0
    %v492 = vadd.f32 %v383, %v491
    %v493 = vpop.f32.mrb[0].mxu0
    %494 = vmatprep.mubr.f32.mxu0 0.0
    %495 = vmatmul.mubr.f32.gmra.mrb[0].mxu0 %v399
    %v496 = vpop.f32.mrb[0].mxu0
    %v497 = vadd.f32 %v383, %v496
    %v498 = vpop.f32.mrb[0].mxu0
    %499 = vmatprep.mubr.f32.mxu0 0.0
    %500 = vmatmul.mubr.f32.gmra.mrb[0].mxu0 %v402
    %v501 = vpop.f32.mrb[0].mxu0
    %v502 = vadd.f32 %v383, %v501
    %v503 = vpop.f32.mrb[0].mxu0
    %504 = vmatprep.mubr.f32.mxu0 0.0
    %505 = vmatmul.mubr.f32.gmra.mrb[0].mxu0 %v405
    %v506 = vpop.f32.mrb[0].mxu0
    %v507 = vadd.f32 %v383, %v506
    %v508 = vpop.f32.mrb[0].mxu0
    %509 = vmatprep.mubr.f32.mxu0 0.0
    %510 = vmatmul.mubr.f32.gmra.mrb[0].mxu0 %v408
    %v511 = vpop.f32.mrb[0].mxu0
    %v512 = vadd.f32 %v383, %v511
    %v513 = vpop.f32.mrb[0].mxu0
    %514 = vdwg.mxu0
    %v515 = vmax.f32 %v477, 0.0
    %v516 = vmax.f32 %v482, 0.0
    %v517 = vmax.f32 %v487, 0.0
    %v518 = vmax.f32 %v492, 0.0
    %v519 = vmax.f32 %v497, 0.0
    %v520 = vmax.f32 %v502, 0.0
    %v521 = vmax.f32 %v507, 0.0
    %v522 = vmax.f32 %v512, 0.0
    %v523 = vld [vmem:[%s0] sm:$0xff]
    %v524 = vld [vmem:[%s0 + $0x8] sm:$0xff]
    %v525 = vld [vmem:[%s0 + $0x10] sm:$0xff]
    %v526 = vld [vmem:[%s0 + $0x18] sm:$0xff]
    %v528 = vsel %vm385, %v523, 0
    %v531 = vsel %vm385, %v524, 0
    %v534 = vsel %vm385, %v525, 0
    %v537 = vsel %vm385, %v526, 0
    %539 = vmatprep.subr.mxu0 0.0
    %540 = vmatpush1.msra.mxu0 %v515
    %541 = vmatprep.subr.mxu0 0.0
    %542 = vmatpush1.msra.mxu0 %v516
    %543 = vmatprep.subr.mxu0 0.0
    %544 = vmatpush1.msra.mxu0 %v517
    %545 = vmatprep.subr.mxu0 0.0
    %546 = vmatpush1.msra.mxu0 %v518
    %547 = vmatprep.subr.mxu0 0.0
    %548 = vmatpush1.msra.mxu0 %v519
    %549 = vmatprep.subr.mxu0 0.0
    %550 = vmatpush1.msra.mxu0 %v520
    %551 = vmatprep.subr.mxu0 0.0
    %552 = vmatpush1.msra.mxu0 %v521
    %553 = vmatprep.subr.mxu0 0.0
    %554 = vmatpush1.msra.mxu0 %v522
    %555 = vmatprep.subr.mxu0 0.0
    %556 = vmatpush1.msra.mxu0 0.0
    %557 = vmatprep.subr.mxu0 0.0
    %558 = vmatpush1.msra.mxu0 0.0
    %559 = vmatprep.subr.mxu0 0.0
    %560 = vmatpush1.msra.mxu0 0.0
    %561 = vmatprep.subr.mxu0 0.0
    %562 = vmatpush1.msra.mxu0 0.0
    %563 = vmatprep.subr.mxu0 0.0
    %564 = vmatpush1.msra.mxu0 0.0
    %565 = vmatprep.subr.mxu0 0.0
    %566 = vmatpush1.msra.mxu0 0.0
    %567 = vmatprep.subr.mxu0 0.0
    %568 = vmatpush1.msra.mxu0 0.0
    %569 = vmatprep.subr.mxu0 0.0
    %570 = vmatpush1.msra.mxu0 0.0
    %571 = vmatprep.subr.mxu0 0.0
    %572 = vmatpush1.msra.mxu0 0.0
    %573 = vmatprep.subr.mxu0 0.0
    %574 = vmatpush1.msra.mxu0 0.0
    %575 = vmatprep.subr.mxu0 0.0
    %576 = vmatpush1.msra.mxu0 0.0
    %577 = vmatprep.subr.mxu0 0.0
    %578 = vmatpush1.msra.mxu0 0.0
    %579 = vmatprep.subr.mxu0 0.0
    %580 = vmatpush1.msra.mxu0 0.0
    %581 = vmatprep.subr.mxu0 0.0
    %582 = vmatpush1.msra.mxu0 0.0
    %583 = vmatprep.subr.mxu0 0.0
    %584 = vmatpush1.msra.mxu0 0.0
    %585 = vmatprep.subr.mxu0 0.0
    %586 = vmatpush1.msra.mxu0 0.0
    %587 = vmatprep.subr.mxu0 0.0
    %588 = vmatpush1.msra.mxu0 0.0
    %589 = vmatprep.subr.mxu0 0.0
    %590 = vmatpush1.msra.mxu0 0.0
    %591 = vmatprep.subr.mxu0 0.0
    %592 = vmatpush1.msra.mxu0 0.0
    %593 = vmatprep.subr.mxu0 0.0
    %594 = vmatpush1.msra.mxu0 0.0
    %595 = vmatprep.subr.mxu0 0.0
    %596 = vmatpush1.msra.mxu0 0.0
    %597 = vmatprep.subr.mxu0 0.0
    %598 = vmatpush1.msra.mxu0 0.0
    %599 = vmatprep.subr.mxu0 0.0
    %600 = vmatpush1.msra.mxu0 0.0
    %601 = vmatprep.subr.mxu0 0.0
    %602 = vmatpush1.msra.mxu0 0.0
    %603 = vmatprep.mubr.f32.mxu0 0.0
    %604 = vmatmul.mubr.f32.gmra.mrb[0].mxu0 %v528
    %v605 = vpop.f32.mrb[0].mxu0
    %v606 = vadd.f32 0.0, %v605
    %v607 = vpop.f32.mrb[0].mxu0
    %608 = vmatprep.mubr.f32.mxu0 0.0
    %609 = vmatmul.mubr.f32.gmra.mrb[0].mxu0 %v531
    %v610 = vpop.f32.mrb[0].mxu0
    %v611 = vadd.f32 0.0, %v610
    %v612 = vpop.f32.mrb[0].mxu0
    %613 = vmatprep.mubr.f32.mxu0 0.0
    %614 = vmatmul.mubr.f32.gmra.mrb[0].mxu0 %v534
    %v615 = vpop.f32.mrb[0].mxu0
    %v616 = vadd.f32 0.0, %v615
    %v617 = vpop.f32.mrb[0].mxu0
    %618 = vmatprep.mubr.f32.mxu0 0.0
    %619 = vmatmul.mubr.f32.gmra.mrb[0].mxu0 %v537
    %v620 = vpop.f32.mrb[0].mxu0
    %v621 = vadd.f32 0.0, %v620
    %v622 = vpop.f32.mrb[0].mxu0
    %623 = vdwg.mxu0
    %v624 = vld [vmem:[#allocation7] sm:$0xff]
    %v625 = vld [vmem:[#allocation7 + $0x8] sm:$0xff]
    %v626 = vld [vmem:[#allocation7 + $0x10] sm:$0xff]
    %v627 = vld [vmem:[#allocation7 + $0x18] sm:$0xff]
    %v628 = vld [vmem:[%s10] sm:$0x1]
    %v630 = vlaneseq
    %v631 = vshrl.u32 %v630, 7
    %v632 = vsub.s32 0, %v631
    %v633 = vrot.slane %v628, %v632
    %v636 = vsel %vm265, %v606, 0
    %v639 = vsel %vm265, %v611, 0
    %v642 = vsel %vm265, %v616, 0
    %v645 = vsel %vm265, %v621, 0
    %647 = vmatprep.subr.mxu0 0.0
    %648 = vmatpush1.msra.mxu0 %v624
    %649 = vmatprep.subr.mxu0 0.0
    %650 = vmatpush1.msra.mxu0 %v625
    %651 = vmatprep.subr.mxu0 0.0
    %652 = vmatpush1.msra.mxu0 %v626
    %653 = vmatprep.subr.mxu0 0.0
    %654 = vmatpush1.msra.mxu0 %v627
    %655 = vmatprep.subr.mxu0 0.0
    %656 = vmatpush1.msra.mxu0 0.0
    %657 = vmatprep.subr.mxu0 0.0
    %658 = vmatpush1.msra.mxu0 0.0
    %659 = vmatprep.subr.mxu0 0.0
    %660 = vmatpush1.msra.mxu0 0.0
    %661 = vmatprep.subr.mxu0 0.0
    %662 = vmatpush1.msra.mxu0 0.0
    %663 = vmatprep.subr.mxu0 0.0
    %664 = vmatpush1.msra.mxu0 0.0
    %665 = vmatprep.subr.mxu0 0.0
    %666 = vmatpush1.msra.mxu0 0.0
    %667 = vmatprep.subr.mxu0 0.0
    %668 = vmatpush1.msra.mxu0 0.0
    %669 = vmatprep.subr.mxu0 0.0
    %670 = vmatpush1.msra.mxu0 0.0
    %671 = vmatprep.subr.mxu0 0.0
    %672 = vmatpush1.msra.mxu0 0.0
    %673 = vmatprep.subr.mxu0 0.0
    %674 = vmatpush1.msra.mxu0 0.0
    %675 = vmatprep.subr.mxu0 0.0
    %676 = vmatpush1.msra.mxu0 0.0
    %677 = vmatprep.subr.mxu0 0.0
    %678 = vmatpush1.msra.mxu0 0.0
    %679 = vmatprep.subr.mxu0 0.0
    %680 = vmatpush1.msra.mxu0 0.0
    %681 = vmatprep.subr.mxu0 0.0
    %682 = vmatpush1.msra.mxu0 0.0
    %683 = vmatprep.subr.mxu0 0.0
    %684 = vmatpush1.msra.mxu0 0.0
    %685 = vmatprep.subr.mxu0 0.0
    %686 = vmatpush1.msra.mxu0 0.0
    %687 = vmatprep.subr.mxu0 0.0
    %688 = vmatpush1.msra.mxu0 0.0
    %689 = vmatprep.subr.mxu0 0.0
    %690 = vmatpush1.msra.mxu0 0.0
    %691 = vmatprep.subr.mxu0 0.0
    %692 = vmatpush1.msra.mxu0 0.0
    %693 = vmatprep.subr.mxu0 0.0
    %694 = vmatpush1.msra.mxu0 0.0
    %695 = vmatprep.subr.mxu0 0.0
    %696 = vmatpush1.msra.mxu0 0.0
    %697 = vmatprep.subr.mxu0 0.0
    %698 = vmatpush1.msra.mxu0 0.0
    %699 = vmatprep.subr.mxu0 0.0
    %700 = vmatpush1.msra.mxu0 0.0
    %701 = vmatprep.subr.mxu0 0.0
    %702 = vmatpush1.msra.mxu0 0.0
    %703 = vmatprep.subr.mxu0 0.0
    %704 = vmatpush1.msra.mxu0 0.0
    %705 = vmatprep.subr.mxu0 0.0
    %706 = vmatpush1.msra.mxu0 0.0
    %707 = vmatprep.subr.mxu0 0.0
    %708 = vmatpush1.msra.mxu0 0.0
    %709 = vmatprep.subr.mxu0 0.0
    %710 = vmatpush1.msra.mxu0 0.0
    %711 = vmatprep.mubr.f32.mxu0 0.0
    %712 = vmatmul.mubr.f32.gmra.mrb[0].mxu0 %v636
    %v713 = vpop.f32.mrb[0].mxu0
    %v714 = vadd.f32 %v633, %v713
    %v715 = vpop.f32.mrb[0].mxu0
    %716 = vmatprep.mubr.f32.mxu0 0.0
    %717 = vmatmul.mubr.f32.gmra.mrb[0].mxu0 %v639
    %v718 = vpop.f32.mrb[0].mxu0
    %v719 = vadd.f32 %v633, %v718
    %v720 = vpop.f32.mrb[0].mxu0
    %721 = vmatprep.mubr.f32.mxu0 0.0
    %722 = vmatmul.mubr.f32.gmra.mrb[0].mxu0 %v642
    %v723 = vpop.f32.mrb[0].mxu0
    %v724 = vadd.f32 %v633, %v723
    %v725 = vpop.f32.mrb[0].mxu0
    %726 = vmatprep.mubr.f32.mxu0 0.0
    %727 = vmatmul.mubr.f32.gmra.mrb[0].mxu0 %v645
    %v728 = vpop.f32.mrb[0].mxu0
    %v729 = vadd.f32 %v633, %v728
    %v730 = vpop.f32.mrb[0].mxu0
    %731 = vdwg.mxu0
    %v732 = vtanh.pop %v714
    %v733 = vtanh.pop %v719
    %v734 = vtanh.pop %v724
    %v735 = vtanh.pop %v729
    %v736 = vld [vmem:[#allocation10] sm:$0xff]
    %v737 = vld [vmem:[#allocation10 + $0x8] sm:$0xff]
    %v738 = vld [vmem:[#allocation10 + $0x10] sm:$0xff]
    %v739 = vld [vmem:[#allocation10 + $0x18] sm:$0xff]
    %v741 = vsel %vm265, %v732, 0
    %v744 = vsel %vm265, %v733, 0
    %v747 = vsel %vm265, %v734, 0
    %v750 = vsel %vm265, %v735, 0
    %752 = vmatprep.subr.mxu0 0.0
    %753 = vmatpush1.msra.mxu0 %v736
    %754 = vmatprep.subr.mxu0 0.0
    %755 = vmatpush1.msra.mxu0 %v737
    %756 = vmatprep.subr.mxu0 0.0
    %757 = vmatpush1.msra.mxu0 %v738
    %758 = vmatprep.subr.mxu0 0.0
    %759 = vmatpush1.msra.mxu0 %v739
    %760 = vmatprep.subr.mxu0 0.0
    %761 = vmatpush1.msra.mxu0 0.0
    %762 = vmatprep.subr.mxu0 0.0
    %763 = vmatpush1.msra.mxu0 0.0
    %764 = vmatprep.subr.mxu0 0.0
    %765 = vmatpush1.msra.mxu0 0.0
    %766 = vmatprep.subr.mxu0 0.0
    %767 = vmatpush1.msra.mxu0 0.0
    %768 = vmatprep.subr.mxu0 0.0
    %769 = vmatpush1.msra.mxu0 0.0
    %770 = vmatprep.subr.mxu0 0.0
    %771 = vmatpush1.msra.mxu0 0.0
    %772 = vmatprep.subr.mxu0 0.0
    %773 = vmatpush1.msra.mxu0 0.0
    %774 = vmatprep.subr.mxu0 0.0
    %775 = vmatpush1.msra.mxu0 0.0
    %776 = vmatprep.subr.mxu0 0.0
    %777 = vmatpush1.msra.mxu0 0.0
    %778 = vmatprep.subr.mxu0 0.0
    %779 = vmatpush1.msra.mxu0 0.0
    %780 = vmatprep.subr.mxu0 0.0
    %781 = vmatpush1.msra.mxu0 0.0
    %782 = vmatprep.subr.mxu0 0.0
    %783 = vmatpush1.msra.mxu0 0.0
    %784 = vmatprep.subr.mxu0 0.0
    %785 = vmatpush1.msra.mxu0 0.0
    %786 = vmatprep.subr.mxu0 0.0
    %787 = vmatpush1.msra.mxu0 0.0
    %788 = vmatprep.subr.mxu0 0.0
    %789 = vmatpush1.msra.mxu0 0.0
    %790 = vmatprep.subr.mxu0 0.0
    %791 = vmatpush1.msra.mxu0 0.0
    %792 = vmatprep.subr.mxu0 0.0
    %793 = vmatpush1.msra.mxu0 0.0
    %794 = vmatprep.subr.mxu0 0.0
    %795 = vmatpush1.msra.mxu0 0.0
    %796 = vmatprep.subr.mxu0 0.0
    %797 = vmatpush1.msra.mxu0 0.0
    %798 = vmatprep.subr.mxu0 0.0
    %799 = vmatpush1.msra.mxu0 0.0
    %800 = vmatprep.subr.mxu0 0.0
    %801 = vmatpush1.msra.mxu0 0.0
    %802 = vmatprep.subr.mxu0 0.0
    %803 = vmatpush1.msra.mxu0 0.0
    %804 = vmatprep.subr.mxu0 0.0
    %805 = vmatpush1.msra.mxu0 0.0
    %806 = vmatprep.subr.mxu0 0.0
    %807 = vmatpush1.msra.mxu0 0.0
    %808 = vmatprep.subr.mxu0 0.0
    %809 = vmatpush1.msra.mxu0 0.0
    %810 = vmatprep.subr.mxu0 0.0
    %811 = vmatpush1.msra.mxu0 0.0
    %812 = vmatprep.subr.mxu0 0.0
    %813 = vmatpush1.msra.mxu0 0.0
    %814 = vmatprep.subr.mxu0 0.0
    %815 = vmatpush1.msra.mxu0 0.0
    %816 = vmatprep.mubr.f32.mxu0 0.0
    %817 = vmatmul.mubr.f32.gmra.mrb[0].mxu0 %v741
    %v818 = vpop.f32.mrb[0].mxu0
    %v819 = vadd.f32 0.0, %v818
    %v820 = vpop.f32.mrb[0].mxu0
    %821 = vmatprep.mubr.f32.mxu0 0.0
    %822 = vmatmul.mubr.f32.gmra.mrb[0].mxu0 %v744
    %v823 = vpop.f32.mrb[0].mxu0
    %v824 = vadd.f32 0.0, %v823
    %v825 = vpop.f32.mrb[0].mxu0
    %826 = vmatprep.mubr.f32.mxu0 0.0
    %827 = vmatmul.mubr.f32.gmra.mrb[0].mxu0 %v747
    %v828 = vpop.f32.mrb[0].mxu0
    %v829 = vadd.f32 0.0, %v828
    %v830 = vpop.f32.mrb[0].mxu0
    %831 = vmatprep.mubr.f32.mxu0 0.0
    %832 = vmatmul.mubr.f32.gmra.mrb[0].mxu0 %v750
    %v833 = vpop.f32.mrb[0].mxu0
    %v834 = vadd.f32 0.0, %v833
    %v835 = vpop.f32.mrb[0].mxu0
    %836 = vdwg.mxu0
    %837 = vst.msk [vmem:[%s18] sm:$0xff] %vm265, %v732
    %838 = vst.msk [vmem:[%s18 + $0x8] sm:$0xff] %vm265, %v733
    %839 = vst.msk [vmem:[%s18 + $0x10] sm:$0xff] %vm265, %v734
    %840 = vst.msk [vmem:[%s18 + $0x18] sm:$0xff] %vm265, %v735
    %v841 = vld [vmem:[%s13] sm:$0x7]
    %v842 = vld [vmem:[%s14] sm:$0x7]
    %843 = vmatprep.subr.mxu0 0.0
    %844 = vmatpush1.xpose.msra.mxu0 %v741
    %845 = vmatprep.subr.mxu0 0.0
    %846 = vmatpush1.xpose.msra.mxu0 0.0
    %847 = vmatprep.subr.mxu0 0.0
    %848 = vmatpush1.xpose.msra.mxu0 0.0
    %849 = vmatprep.subr.mxu0 0.0
    %850 = vmatpush1.xpose.msra.mxu0 0.0
    %851 = vmatprep.subr.mxu0 0.0
    %852 = vmatpush1.xpose.msra.mxu0 0.0
    %853 = vmatprep.subr.mxu0 0.0
    %854 = vmatpush1.xpose.msra.mxu0 0.0
    %855 = vmatprep.subr.mxu0 0.0
    %856 = vmatpush1.xpose.msra.mxu0 0.0
    %857 = vmatprep.subr.mxu0 0.0
    %858 = vmatpush1.xpose.msra.mxu0 0.0
    %859 = vmatprep.subr.mxu0 0.0
    %860 = vmatpush1.xpose.msra.mxu0 0.0
    %861 = vmatprep.subr.mxu0 0.0
    %862 = vmatpush1.xpose.msra.mxu0 0.0
    %863 = vmatprep.subr.mxu0 0.0
    %864 = vmatpush1.xpose.msra.mxu0 0.0
    %865 = vmatprep.subr.mxu0 0.0
    %866 = vmatpush1.xpose.msra.mxu0 0.0
    %867 = vmatprep.subr.mxu0 0.0
    %868 = vmatpush1.xpose.msra.mxu0 0.0
    %869 = vmatprep.subr.mxu0 0.0
    %870 = vmatpush1.xpose.msra.mxu0 0.0
    %871 = vmatprep.subr.mxu0 0.0
    %872 = vmatpush1.xpose.msra.mxu0 0.0
    %873 = vmatprep.subr.mxu0 0.0
    %874 = vmatpush1.xpose.msra.mxu0 0.0
    %875 = vmatprep.subr.mxu0 0.0
    %876 = vmatpush1.xpose.msra.mxu0 0.0
    %877 = vmatprep.subr.mxu0 0.0
    %878 = vmatpush1.xpose.msra.mxu0 0.0
    %879 = vmatprep.subr.mxu0 0.0
    %880 = vmatpush1.xpose.msra.mxu0 0.0
    %881 = vmatprep.subr.mxu0 0.0
    %882 = vmatpush1.xpose.msra.mxu0 0.0
    %883 = vmatprep.subr.mxu0 0.0
    %884 = vmatpush1.xpose.msra.mxu0 0.0
    %885 = vmatprep.subr.mxu0 0.0
    %886 = vmatpush1.xpose.msra.mxu0 0.0
    %887 = vmatprep.subr.mxu0 0.0
    %888 = vmatpush1.xpose.msra.mxu0 0.0
    %889 = vmatprep.subr.mxu0 0.0
    %890 = vmatpush1.xpose.msra.mxu0 0.0
    %891 = vmatprep.subr.mxu0 0.0
    %892 = vmatpush1.xpose.msra.mxu0 0.0
    %893 = vmatprep.subr.mxu0 0.0
    %894 = vmatpush1.xpose.msra.mxu0 0.0
    %895 = vmatprep.subr.mxu0 0.0
    %896 = vmatpush1.xpose.msra.mxu0 0.0
    %897 = vmatprep.subr.mxu0 0.0
    %898 = vmatpush1.xpose.msra.mxu0 0.0
    %899 = vmatprep.subr.mxu0 0.0
    %900 = vmatpush1.xpose.msra.mxu0 0.0
    %901 = vmatprep.subr.mxu0 0.0
    %902 = vmatpush1.xpose.msra.mxu0 0.0
    %903 = vmatprep.subr.mxu0 0.0
    %904 = vmatpush1.xpose.msra.mxu0 0.0
    %905 = vmatprep.subr.mxu0 0.0
    %906 = vmatpush1.xpose.msra.mxu0 0.0
    %907 = vmatprep.mubr.f32.mxu0 0.0
    %908 = vmatmul.mubr.f32.gmra.mrb[0].mxu0 %v267
    %v909 = vpop.f32.mrb[0].mxu0
    %v910 = vadd.f32 0.0, %v909
    %v911 = vpop.f32.mrb[0].mxu0
    %912 = vdwg.mxu0
    %v913 = vmul.f32 %v910, 0.17677669
    %915 = vset.pattern.permute.xlu0 0
    %916 = vperm.xlu0 %915, %v842
    %v917 = vpop.permute.xlu0 %916
    %v920 = vsel %vm265, %v841, 0
    %922 = vmatprep.subr.mxu0 0.0
    %923 = vmatpush1.xpose.msra.mxu0 %v741
    %924 = vmatprep.subr.mxu0 0.0
    %925 = vmatpush1.xpose.msra.mxu0 0.0
    %926 = vmatprep.subr.mxu0 0.0
    %927 = vmatpush1.xpose.msra.mxu0 0.0
    %928 = vmatprep.subr.mxu0 0.0
    %929 = vmatpush1.xpose.msra.mxu0 0.0
    %930 = vmatprep.subr.mxu0 0.0
    %931 = vmatpush1.xpose.msra.mxu0 0.0
    %932 = vmatprep.subr.mxu0 0.0
    %933 = vmatpush1.xpose.msra.mxu0 0.0
    %934 = vmatprep.subr.mxu0 0.0
    %935 = vmatpush1.xpose.msra.mxu0 0.0
    %936 = vmatprep.subr.mxu0 0.0
    %937 = vmatpush1.xpose.msra.mxu0 0.0
    %938 = vmatprep.subr.mxu0 0.0
    %939 = vmatpush1.xpose.msra.mxu0 0.0
    %940 = vmatprep.subr.mxu0 0.0
    %941 = vmatpush1.xpose.msra.mxu0 0.0
    %942 = vmatprep.subr.mxu0 0.0
    %943 = vmatpush1.xpose.msra.mxu0 0.0
    %944 = vmatprep.subr.mxu0 0.0
    %945 = vmatpush1.xpose.msra.mxu0 0.0
    %946 = vmatprep.subr.mxu0 0.0
    %947 = vmatpush1.xpose.msra.mxu0 0.0
    %948 = vmatprep.subr.mxu0 0.0
    %949 = vmatpush1.xpose.msra.mxu0 0.0
    %950 = vmatprep.subr.mxu0 0.0
    %951 = vmatpush1.xpose.msra.mxu0 0.0
    %952 = vmatprep.subr.mxu0 0.0
    %953 = vmatpush1.xpose.msra.mxu0 0.0
    %954 = vmatprep.subr.mxu0 0.0
    %955 = vmatpush1.xpose.msra.mxu0 0.0
    %956 = vmatprep.subr.mxu0 0.0
    %957 = vmatpush1.xpose.msra.mxu0 0.0
    %958 = vmatprep.subr.mxu0 0.0
    %959 = vmatpush1.xpose.msra.mxu0 0.0
    %960 = vmatprep.subr.mxu0 0.0
    %961 = vmatpush1.xpose.msra.mxu0 0.0
    %962 = vmatprep.subr.mxu0 0.0
    %963 = vmatpush1.xpose.msra.mxu0 0.0
    %964 = vmatprep.subr.mxu0 0.0
    %965 = vmatpush1.xpose.msra.mxu0 0.0
    %966 = vmatprep.subr.mxu0 0.0
    %967 = vmatpush1.xpose.msra.mxu0 0.0
    %968 = vmatprep.subr.mxu0 0.0
    %969 = vmatpush1.xpose.msra.mxu0 0.0
    %970 = vmatprep.subr.mxu0 0.0
    %971 = vmatpush1.xpose.msra.mxu0 0.0
    %972 = vmatprep.subr.mxu0 0.0
    %973 = vmatpush1.xpose.msra.mxu0 0.0
    %974 = vmatprep.subr.mxu0 0.0
    %975 = vmatpush1.xpose.msra.mxu0 0.0
    %976 = vmatprep.subr.mxu0 0.0
    %977 = vmatpush1.xpose.msra.mxu0 0.0
    %978 = vmatprep.subr.mxu0 0.0
    %979 = vmatpush1.xpose.msra.mxu0 0.0
    %980 = vmatprep.subr.mxu0 0.0
    %981 = vmatpush1.xpose.msra.mxu0 0.0
    %982 = vmatprep.subr.mxu0 0.0
    %983 = vmatpush1.xpose.msra.mxu0 0.0
    %984 = vmatprep.subr.mxu0 0.0
    %985 = vmatpush1.xpose.msra.mxu0 0.0
    %986 = vmatprep.mubr.f32.mxu0 0.0
    %987 = vmatmul.mubr.f32.gmra.mrb[0].mxu0 %v920
    %v988 = vpop.f32.mrb[0].mxu0
    %v989 = vadd.f32 %v917, %v988
    %v990 = vpop.f32.mrb[0].mxu0
    %991 = vdwg.mxu0
    %v993 = vsel %vm265, %v819, 0
    %995 = vmatprep.subr.mxu0 0.0
    %996 = vmatpush1.xpose.msra.mxu0 %v741
    %997 = vmatprep.subr.mxu0 0.0
    %998 = vmatpush1.xpose.msra.mxu0 0.0
    %999 = vmatprep.subr.mxu0 0.0
    %1000 = vmatpush1.xpose.msra.mxu0 0.0
    %1001 = vmatprep.subr.mxu0 0.0
    %1002 = vmatpush1.xpose.msra.mxu0 0.0
    %1003 = vmatprep.subr.mxu0 0.0
    %1004 = vmatpush1.xpose.msra.mxu0 0.0
    %1005 = vmatprep.subr.mxu0 0.0
    %1006 = vmatpush1.xpose.msra.mxu0 0.0
    %1007 = vmatprep.subr.mxu0 0.0
    %1008 = vmatpush1.xpose.msra.mxu0 0.0
    %1009 = vmatprep.subr.mxu0 0.0
    %1010 = vmatpush1.xpose.msra.mxu0 0.0
    %1011 = vmatprep.subr.mxu0 0.0
    %1012 = vmatpush1.xpose.msra.mxu0 0.0
    %1013 = vmatprep.subr.mxu0 0.0
    %1014 = vmatpush1.xpose.msra.mxu0 0.0
    %1015 = vmatprep.subr.mxu0 0.0
    %1016 = vmatpush1.xpose.msra.mxu0 0.0
    %1017 = vmatprep.subr.mxu0 0.0
    %1018 = vmatpush1.xpose.msra.mxu0 0.0
    %1019 = vmatprep.subr.mxu0 0.0
    %1020 = vmatpush1.xpose.msra.mxu0 0.0
    %1021 = vmatprep.subr.mxu0 0.0
    %1022 = vmatpush1.xpose.msra.mxu0 0.0
    %1023 = vmatprep.subr.mxu0 0.0
    %1024 = vmatpush1.xpose.msra.mxu0 0.0
    %1025 = vmatprep.subr.mxu0 0.0
    %1026 = vmatpush1.xpose.msra.mxu0 0.0
    %1027 = vmatprep.subr.mxu0 0.0
    %1028 = vmatpush1.xpose.msra.mxu0 0.0
    %1029 = vmatprep.subr.mxu0 0.0
    %1030 = vmatpush1.xpose.msra.mxu0 0.0
    %1031 = vmatprep.subr.mxu0 0.0
    %1032 = vmatpush1.xpose.msra.mxu0 0.0
    %1033 = vmatprep.subr.mxu0 0.0
    %1034 = vmatpush1.xpose.msra.mxu0 0.0
    %1035 = vmatprep.subr.mxu0 0.0
    %1036 = vmatpush1.xpose.msra.mxu0 0.0
    %1037 = vmatprep.subr.mxu0 0.0
    %1038 = vmatpush1.xpose.msra.mxu0 0.0
    %1039 = vmatprep.subr.mxu0 0.0
    %1040 = vmatpush1.xpose.msra.mxu0 0.0
    %1041 = vmatprep.subr.mxu0 0.0
    %1042 = vmatpush1.xpose.msra.mxu0 0.0
    %1043 = vmatprep.subr.mxu0 0.0
    %1044 = vmatpush1.xpose.msra.mxu0 0.0
    %1045 = vmatprep.subr.mxu0 0.0
    %1046 = vmatpush1.xpose.msra.mxu0 0.0
    %1047 = vmatprep.subr.mxu0 0.0
    %1048 = vmatpush1.xpose.msra.mxu0 0.0
    %1049 = vmatprep.subr.mxu0 0.0
    %1050 = vmatpush1.xpose.msra.mxu0 0.0
    %1051 = vmatprep.subr.mxu0 0.0
    %1052 = vmatpush1.xpose.msra.mxu0 0.0
    %1053 = vmatprep.subr.mxu0 0.0
    %1054 = vmatpush1.xpose.msra.mxu0 0.0
    %1055 = vmatprep.subr.mxu0 0.0
    %1056 = vmatpush1.xpose.msra.mxu0 0.0
    %1057 = vmatprep.subr.mxu0 0.0
    %1058 = vmatpush1.xpose.msra.mxu0 0.0
    %1059 = vmatprep.mubr.f32.mxu0 0.0
    %1060 = vmatmul.mubr.f32.gmra.mrb[0].mxu0 %v993
    %v1061 = vpop.f32.mrb[0].mxu0
    %v1062 = vadd.f32 0.0, %v1061
    %v1063 = vpop.f32.mrb[0].mxu0
    %1064 = vdwg.mxu0
    %vm1065 = vcmask 64512
    %1066 = vst.msk [vmem:[%s19] sm:$0xff] %vm1065, %v913
    %vm1067 = vcmask 59392
    %1068 = vst.msk [vmem:[%s20] sm:$0x7] %vm1067, %v989
    %1069 = vst.msk [vmem:[%s21] sm:$0xff] %vm1065, %v1062
    %1070 = vmatprep.subr.mxu0 0.0
    %1071 = vmatpush1.xpose.msra.mxu0 %v744
    %1072 = vmatprep.subr.mxu0 0.0
    %1073 = vmatpush1.xpose.msra.mxu0 0.0
    %1074 = vmatprep.subr.mxu0 0.0
    %1075 = vmatpush1.xpose.msra.mxu0 0.0
    %1076 = vmatprep.subr.mxu0 0.0
    %1077 = vmatpush1.xpose.msra.mxu0 0.0
    %1078 = vmatprep.subr.mxu0 0.0
    %1079 = vmatpush1.xpose.msra.mxu0 0.0
    %1080 = vmatprep.subr.mxu0 0.0
    %1081 = vmatpush1.xpose.msra.mxu0 0.0
    %1082 = vmatprep.subr.mxu0 0.0
    %1083 = vmatpush1.xpose.msra.mxu0 0.0
    %1084 = vmatprep.subr.mxu0 0.0
    %1085 = vmatpush1.xpose.msra.mxu0 0.0
    %1086 = vmatprep.subr.mxu0 0.0
    %1087 = vmatpush1.xpose.msra.mxu0 0.0
    %1088 = vmatprep.subr.mxu0 0.0
    %1089 = vmatpush1.xpose.msra.mxu0 0.0
    %1090 = vmatprep.subr.mxu0 0.0
    %1091 = vmatpush1.xpose.msra.mxu0 0.0
    %1092 = vmatprep.subr.mxu0 0.0
    %1093 = vmatpush1.xpose.msra.mxu0 0.0
    %1094 = vmatprep.subr.mxu0 0.0
    %1095 = vmatpush1.xpose.msra.mxu0 0.0
    %1096 = vmatprep.subr.mxu0 0.0
    %1097 = vmatpush1.xpose.msra.mxu0 0.0
    %1098 = vmatprep.subr.mxu0 0.0
    %1099 = vmatpush1.xpose.msra.mxu0 0.0
    %1100 = vmatprep.subr.mxu0 0.0
    %1101 = vmatpush1.xpose.msra.mxu0 0.0
    %1102 = vmatprep.subr.mxu0 0.0
    %1103 = vmatpush1.xpose.msra.mxu0 0.0
    %1104 = vmatprep.subr.mxu0 0.0
    %1105 = vmatpush1.xpose.msra.mxu0 0.0
    %1106 = vmatprep.subr.mxu0 0.0
    %1107 = vmatpush1.xpose.msra.mxu0 0.0
    %1108 = vmatprep.subr.mxu0 0.0
    %1109 = vmatpush1.xpose.msra.mxu0 0.0
    %1110 = vmatprep.subr.mxu0 0.0
    %1111 = vmatpush1.xpose.msra.mxu0 0.0
    %1112 = vmatprep.subr.mxu0 0.0
    %1113 = vmatpush1.xpose.msra.mxu0 0.0
    %1114 = vmatprep.subr.mxu0 0.0
    %1115 = vmatpush1.xpose.msra.mxu0 0.0
    %1116 = vmatprep.subr.mxu0 0.0
    %1117 = vmatpush1.xpose.msra.mxu0 0.0
    %1118 = vmatprep.subr.mxu0 0.0
    %1119 = vmatpush1.xpose.msra.mxu0 0.0
    %1120 = vmatprep.subr.mxu0 0.0
    %1121 = vmatpush1.xpose.msra.mxu0 0.0
    %1122 = vmatprep.subr.mxu0 0.0
    %1123 = vmatpush1.xpose.msra.mxu0 0.0
    %1124 = vmatprep.subr.mxu0 0.0
    %1125 = vmatpush1.xpose.msra.mxu0 0.0
    %1126 = vmatprep.subr.mxu0 0.0
    %1127 = vmatpush1.xpose.msra.mxu0 0.0
    %1128 = vmatprep.subr.mxu0 0.0
    %1129 = vmatpush1.xpose.msra.mxu0 0.0
    %1130 = vmatprep.subr.mxu0 0.0
    %1131 = vmatpush1.xpose.msra.mxu0 0.0
    %1132 = vmatprep.subr.mxu0 0.0
    %1133 = vmatpush1.xpose.msra.mxu0 0.0
    %1134 = vmatprep.mubr.f32.mxu0 0.0
    %1135 = vmatmul.mubr.f32.gmra.mrb[0].mxu0 %v270
    %v1136 = vpop.f32.mrb[0].mxu0
    %v1137 = vadd.f32 0.0, %v1136
    %v1138 = vpop.f32.mrb[0].mxu0
    %1139 = vdwg.mxu0
    %v1140 = vmul.f32 %v1137, 0.17677669
    %1141 = vmatprep.subr.mxu0 0.0
    %1142 = vmatpush1.xpose.msra.mxu0 %v744
    %1143 = vmatprep.subr.mxu0 0.0
    %1144 = vmatpush1.xpose.msra.mxu0 0.0
    %1145 = vmatprep.subr.mxu0 0.0
    %1146 = vmatpush1.xpose.msra.mxu0 0.0
    %1147 = vmatprep.subr.mxu0 0.0
    %1148 = vmatpush1.xpose.msra.mxu0 0.0
    %1149 = vmatprep.subr.mxu0 0.0
    %1150 = vmatpush1.xpose.msra.mxu0 0.0
    %1151 = vmatprep.subr.mxu0 0.0
    %1152 = vmatpush1.xpose.msra.mxu0 0.0
    %1153 = vmatprep.subr.mxu0 0.0
    %1154 = vmatpush1.xpose.msra.mxu0 0.0
    %1155 = vmatprep.subr.mxu0 0.0
    %1156 = vmatpush1.xpose.msra.mxu0 0.0
    %1157 = vmatprep.subr.mxu0 0.0
    %1158 = vmatpush1.xpose.msra.mxu0 0.0
    %1159 = vmatprep.subr.mxu0 0.0
    %1160 = vmatpush1.xpose.msra.mxu0 0.0
    %1161 = vmatprep.subr.mxu0 0.0
    %1162 = vmatpush1.xpose.msra.mxu0 0.0
    %1163 = vmatprep.subr.mxu0 0.0
    %1164 = vmatpush1.xpose.msra.mxu0 0.0
    %1165 = vmatprep.subr.mxu0 0.0
    %1166 = vmatpush1.xpose.msra.mxu0 0.0
    %1167 = vmatprep.subr.mxu0 0.0
    %1168 = vmatpush1.xpose.msra.mxu0 0.0
    %1169 = vmatprep.subr.mxu0 0.0
    %1170 = vmatpush1.xpose.msra.mxu0 0.0
    %1171 = vmatprep.subr.mxu0 0.0
    %1172 = vmatpush1.xpose.msra.mxu0 0.0
    %1173 = vmatprep.subr.mxu0 0.0
    %1174 = vmatpush1.xpose.msra.mxu0 0.0
    %1175 = vmatprep.subr.mxu0 0.0
    %1176 = vmatpush1.xpose.msra.mxu0 0.0
    %1177 = vmatprep.subr.mxu0 0.0
    %1178 = vmatpush1.xpose.msra.mxu0 0.0
    %1179 = vmatprep.subr.mxu0 0.0
    %1180 = vmatpush1.xpose.msra.mxu0 0.0
    %1181 = vmatprep.subr.mxu0 0.0
    %1182 = vmatpush1.xpose.msra.mxu0 0.0
    %1183 = vmatprep.subr.mxu0 0.0
    %1184 = vmatpush1.xpose.msra.mxu0 0.0
    %1185 = vmatprep.subr.mxu0 0.0
    %1186 = vmatpush1.xpose.msra.mxu0 0.0
    %1187 = vmatprep.subr.mxu0 0.0
    %1188 = vmatpush1.xpose.msra.mxu0 0.0
    %1189 = vmatprep.subr.mxu0 0.0
    %1190 = vmatpush1.xpose.msra.mxu0 0.0
    %1191 = vmatprep.subr.mxu0 0.0
    %1192 = vmatpush1.xpose.msra.mxu0 0.0
    %1193 = vmatprep.subr.mxu0 0.0
    %1194 = vmatpush1.xpose.msra.mxu0 0.0
    %1195 = vmatprep.subr.mxu0 0.0
    %1196 = vmatpush1.xpose.msra.mxu0 0.0
    %1197 = vmatprep.subr.mxu0 0.0
    %1198 = vmatpush1.xpose.msra.mxu0 0.0
    %1199 = vmatprep.subr.mxu0 0.0
    %1200 = vmatpush1.xpose.msra.mxu0 0.0
    %1201 = vmatprep.subr.mxu0 0.0
    %1202 = vmatpush1.xpose.msra.mxu0 0.0
    %1203 = vmatprep.subr.mxu0 0.0
    %1204 = vmatpush1.xpose.msra.mxu0 0.0
    %1205 = vmatprep.mubr.f32.mxu0 0.0
    %1206 = vmatmul.mubr.f32.gmra.mrb[0].mxu0 %v920
    %v1207 = vpop.f32.mrb[0].mxu0
    %v1208 = vadd.f32 %v917, %v1207
    %v1209 = vpop.f32.mrb[0].mxu0
    %1210 = vdwg.mxu0
    %v1212 = vsel %vm265, %v824, 0
    %1214 = vmatprep.subr.mxu0 0.0
    %1215 = vmatpush1.xpose.msra.mxu0 %v744
    %1216 = vmatprep.subr.mxu0 0.0
    %1217 = vmatpush1.xpose.msra.mxu0 0.0
    %1218 = vmatprep.subr.mxu0 0.0
    %1219 = vmatpush1.xpose.msra.mxu0 0.0
    %1220 = vmatprep.subr.mxu0 0.0
    %1221 = vmatpush1.xpose.msra.mxu0 0.0
    %1222 = vmatprep.subr.mxu0 0.0
    %1223 = vmatpush1.xpose.msra.mxu0 0.0
    %1224 = vmatprep.subr.mxu0 0.0
    %1225 = vmatpush1.xpose.msra.mxu0 0.0
    %1226 = vmatprep.subr.mxu0 0.0
    %1227 = vmatpush1.xpose.msra.mxu0 0.0
    %1228 = vmatprep.subr.mxu0 0.0
    %1229 = vmatpush1.xpose.msra.mxu0 0.0
    %1230 = vmatprep.subr.mxu0 0.0
    %1231 = vmatpush1.xpose.msra.mxu0 0.0
    %1232 = vmatprep.subr.mxu0 0.0
    %1233 = vmatpush1.xpose.msra.mxu0 0.0
    %1234 = vmatprep.subr.mxu0 0.0
    %1235 = vmatpush1.xpose.msra.mxu0 0.0
    %1236 = vmatprep.subr.mxu0 0.0
    %1237 = vmatpush1.xpose.msra.mxu0 0.0
    %1238 = vmatprep.subr.mxu0 0.0
    %1239 = vmatpush1.xpose.msra.mxu0 0.0
    %1240 = vmatprep.subr.mxu0 0.0
    %1241 = vmatpush1.xpose.msra.mxu0 0.0
    %1242 = vmatprep.subr.mxu0 0.0
    %1243 = vmatpush1.xpose.msra.mxu0 0.0
    %1244 = vmatprep.subr.mxu0 0.0
    %1245 = vmatpush1.xpose.msra.mxu0 0.0
    %1246 = vmatprep.subr.mxu0 0.0
    %1247 = vmatpush1.xpose.msra.mxu0 0.0
    %1248 = vmatprep.subr.mxu0 0.0
    %1249 = vmatpush1.xpose.msra.mxu0 0.0
    %1250 = vmatprep.subr.mxu0 0.0
    %1251 = vmatpush1.xpose.msra.mxu0 0.0
    %1252 = vmatprep.subr.mxu0 0.0
    %1253 = vmatpush1.xpose.msra.mxu0 0.0
    %1254 = vmatprep.subr.mxu0 0.0
    %1255 = vmatpush1.xpose.msra.mxu0 0.0
    %1256 = vmatprep.subr.mxu0 0.0
    %1257 = vmatpush1.xpose.msra.mxu0 0.0
    %1258 = vmatprep.subr.mxu0 0.0
    %1259 = vmatpush1.xpose.msra.mxu0 0.0
    %1260 = vmatprep.subr.mxu0 0.0
    %1261 = vmatpush1.xpose.msra.mxu0 0.0
    %1262 = vmatprep.subr.mxu0 0.0
    %1263 = vmatpush1.xpose.msra.mxu0 0.0
    %1264 = vmatprep.subr.mxu0 0.0
    %1265 = vmatpush1.xpose.msra.mxu0 0.0
    %1266 = vmatprep.subr.mxu0 0.0
    %1267 = vmatpush1.xpose.msra.mxu0 0.0
    %1268 = vmatprep.subr.mxu0 0.0
    %1269 = vmatpush1.xpose.msra.mxu0 0.0
    %1270 = vmatprep.subr.mxu0 0.0
    %1271 = vmatpush1.xpose.msra.mxu0 0.0
    %1272 = vmatprep.subr.mxu0 0.0
    %1273 = vmatpush1.xpose.msra.mxu0 0.0
    %1274 = vmatprep.subr.mxu0 0.0
    %1275 = vmatpush1.xpose.msra.mxu0 0.0
    %1276 = vmatprep.subr.mxu0 0.0
    %1277 = vmatpush1.xpose.msra.mxu0 0.0
    %1278 = vmatprep.mubr.f32.mxu0 0.0
    %1279 = vmatmul.mubr.f32.gmra.mrb[0].mxu0 %v1212
    %v1280 = vpop.f32.mrb[0].mxu0
    %v1281 = vadd.f32 0.0, %v1280
    %v1282 = vpop.f32.mrb[0].mxu0
    %1283 = vdwg.mxu0
    %s1284 = scalar_lea.vmem %s19, 8
    %1285 = vst.msk [vmem:[%s1284] sm:$0xff] %vm1065, %v1140
    %s1286 = scalar_lea.vmem %s20, 4
    %1287 = vst.msk [vmem:[%s1286] sm:$0x7] %vm1067, %v1208
    %s1288 = scalar_lea.vmem %s21, 8
    %1289 = vst.msk [vmem:[%s1288] sm:$0xff] %vm1065, %v1281
    %1290 = vmatprep.subr.mxu0 0.0
    %1291 = vmatpush1.xpose.msra.mxu0 %v747
    %1292 = vmatprep.subr.mxu0 0.0
    %1293 = vmatpush1.xpose.msra.mxu0 0.0
    %1294 = vmatprep.subr.mxu0 0.0
    %1295 = vmatpush1.xpose.msra.mxu0 0.0
    %1296 = vmatprep.subr.mxu0 0.0
    %1297 = vmatpush1.xpose.msra.mxu0 0.0
    %1298 = vmatprep.subr.mxu0 0.0
    %1299 = vmatpush1.xpose.msra.mxu0 0.0
    %1300 = vmatprep.subr.mxu0 0.0
    %1301 = vmatpush1.xpose.msra.mxu0 0.0
    %1302 = vmatprep.subr.mxu0 0.0
    %1303 = vmatpush1.xpose.msra.mxu0 0.0
    %1304 = vmatprep.subr.mxu0 0.0
    %1305 = vmatpush1.xpose.msra.mxu0 0.0
    %1306 = vmatprep.subr.mxu0 0.0
    %1307 = vmatpush1.xpose.msra.mxu0 0.0
    %1308 = vmatprep.subr.mxu0 0.0
    %1309 = vmatpush1.xpose.msra.mxu0 0.0
    %1310 = vmatprep.subr.mxu0 0.0
    %1311 = vmatpush1.xpose.msra.mxu0 0.0
    %1312 = vmatprep.subr.mxu0 0.0
    %1313 = vmatpush1.xpose.msra.mxu0 0.0
    %1314 = vmatprep.subr.mxu0 0.0
    %1315 = vmatpush1.xpose.msra.mxu0 0.0
    %1316 = vmatprep.subr.mxu0 0.0
    %1317 = vmatpush1.xpose.msra.mxu0 0.0
    %1318 = vmatprep.subr.mxu0 0.0
    %1319 = vmatpush1.xpose.msra.mxu0 0.0
    %1320 = vmatprep.subr.mxu0 0.0
    %1321 = vmatpush1.xpose.msra.mxu0 0.0
    %1322 = vmatprep.subr.mxu0 0.0
    %1323 = vmatpush1.xpose.msra.mxu0 0.0
    %1324 = vmatprep.subr.mxu0 0.0
    %1325 = vmatpush1.xpose.msra.mxu0 0.0
    %1326 = vmatprep.subr.mxu0 0.0
    %1327 = vmatpush1.xpose.msra.mxu0 0.0
    %1328 = vmatprep.subr.mxu0 0.0
    %1329 = vmatpush1.xpose.msra.mxu0 0.0
    %1330 = vmatprep.subr.mxu0 0.0
    %1331 = vmatpush1.xpose.msra.mxu0 0.0
    %1332 = vmatprep.subr.mxu0 0.0
    %1333 = vmatpush1.xpose.msra.mxu0 0.0
    %1334 = vmatprep.subr.mxu0 0.0
    %1335 = vmatpush1.xpose.msra.mxu0 0.0
    %1336 = vmatprep.subr.mxu0 0.0
    %1337 = vmatpush1.xpose.msra.mxu0 0.0
    %1338 = vmatprep.subr.mxu0 0.0
    %1339 = vmatpush1.xpose.msra.mxu0 0.0
    %1340 = vmatprep.subr.mxu0 0.0
    %1341 = vmatpush1.xpose.msra.mxu0 0.0
    %1342 = vmatprep.subr.mxu0 0.0
    %1343 = vmatpush1.xpose.msra.mxu0 0.0
    %1344 = vmatprep.subr.mxu0 0.0
    %1345 = vmatpush1.xpose.msra.mxu0 0.0
    %1346 = vmatprep.subr.mxu0 0.0
    %1347 = vmatpush1.xpose.msra.mxu0 0.0
    %1348 = vmatprep.subr.mxu0 0.0
    %1349 = vmatpush1.xpose.msra.mxu0 0.0
    %1350 = vmatprep.subr.mxu0 0.0
    %1351 = vmatpush1.xpose.msra.mxu0 0.0
    %1352 = vmatprep.subr.mxu0 0.0
    %1353 = vmatpush1.xpose.msra.mxu0 0.0
    %1354 = vmatprep.mubr.f32.mxu0 0.0
    %1355 = vmatmul.mubr.f32.gmra.mrb[0].mxu0 %v267
    %v1356 = vpop.f32.mrb[0].mxu0
    %v1357 = vadd.f32 0.0, %v1356
    %v1358 = vpop.f32.mrb[0].mxu0
    %1359 = vdwg.mxu0
    %v1360 = vmul.f32 %v1357, 0.17677669
    %1361 = vmatprep.subr.mxu0 0.0
    %1362 = vmatpush1.xpose.msra.mxu0 %v747
    %1363 = vmatprep.subr.mxu0 0.0
    %1364 = vmatpush1.xpose.msra.mxu0 0.0
    %1365 = vmatprep.subr.mxu0 0.0
    %1366 = vmatpush1.xpose.msra.mxu0 0.0
    %1367 = vmatprep.subr.mxu0 0.0
    %1368 = vmatpush1.xpose.msra.mxu0 0.0
    %1369 = vmatprep.subr.mxu0 0.0
    %1370 = vmatpush1.xpose.msra.mxu0 0.0
    %1371 = vmatprep.subr.mxu0 0.0
    %1372 = vmatpush1.xpose.msra.mxu0 0.0
    %1373 = vmatprep.subr.mxu0 0.0
    %1374 = vmatpush1.xpose.msra.mxu0 0.0
    %1375 = vmatprep.subr.mxu0 0.0
    %1376 = vmatpush1.xpose.msra.mxu0 0.0
    %1377 = vmatprep.subr.mxu0 0.0
    %1378 = vmatpush1.xpose.msra.mxu0 0.0
    %1379 = vmatprep.subr.mxu0 0.0
    %1380 = vmatpush1.xpose.msra.mxu0 0.0
    %1381 = vmatprep.subr.mxu0 0.0
    %1382 = vmatpush1.xpose.msra.mxu0 0.0
    %1383 = vmatprep.subr.mxu0 0.0
    %1384 = vmatpush1.xpose.msra.mxu0 0.0
    %1385 = vmatprep.subr.mxu0 0.0
    %1386 = vmatpush1.xpose.msra.mxu0 0.0
    %1387 = vmatprep.subr.mxu0 0.0
    %1388 = vmatpush1.xpose.msra.mxu0 0.0
    %1389 = vmatprep.subr.mxu0 0.0
    %1390 = vmatpush1.xpose.msra.mxu0 0.0
    %1391 = vmatprep.subr.mxu0 0.0
    %1392 = vmatpush1.xpose.msra.mxu0 0.0
    %1393 = vmatprep.subr.mxu0 0.0
    %1394 = vmatpush1.xpose.msra.mxu0 0.0
    %1395 = vmatprep.subr.mxu0 0.0
    %1396 = vmatpush1.xpose.msra.mxu0 0.0
    %1397 = vmatprep.subr.mxu0 0.0
    %1398 = vmatpush1.xpose.msra.mxu0 0.0
    %1399 = vmatprep.subr.mxu0 0.0
    %1400 = vmatpush1.xpose.msra.mxu0 0.0
    %1401 = vmatprep.subr.mxu0 0.0
    %1402 = vmatpush1.xpose.msra.mxu0 0.0
    %1403 = vmatprep.subr.mxu0 0.0
    %1404 = vmatpush1.xpose.msra.mxu0 0.0
    %1405 = vmatprep.subr.mxu0 0.0
    %1406 = vmatpush1.xpose.msra.mxu0 0.0
    %1407 = vmatprep.subr.mxu0 0.0
    %1408 = vmatpush1.xpose.msra.mxu0 0.0
    %1409 = vmatprep.subr.mxu0 0.0
    %1410 = vmatpush1.xpose.msra.mxu0 0.0
    %1411 = vmatprep.subr.mxu0 0.0
    %1412 = vmatpush1.xpose.msra.mxu0 0.0
    %1413 = vmatprep.subr.mxu0 0.0
    %1414 = vmatpush1.xpose.msra.mxu0 0.0
    %1415 = vmatprep.subr.mxu0 0.0
    %1416 = vmatpush1.xpose.msra.mxu0 0.0
    %1417 = vmatprep.subr.mxu0 0.0
    %1418 = vmatpush1.xpose.msra.mxu0 0.0
    %1419 = vmatprep.subr.mxu0 0.0
    %1420 = vmatpush1.xpose.msra.mxu0 0.0
    %1421 = vmatprep.subr.mxu0 0.0
    %1422 = vmatpush1.xpose.msra.mxu0 0.0
    %1423 = vmatprep.subr.mxu0 0.0
    %1424 = vmatpush1.xpose.msra.mxu0 0.0
    %1425 = vmatprep.mubr.f32.mxu0 0.0
    %1426 = vmatmul.mubr.f32.gmra.mrb[0].mxu0 %v920
    %v1427 = vpop.f32.mrb[0].mxu0
    %v1428 = vadd.f32 %v917, %v1427
    %v1429 = vpop.f32.mrb[0].mxu0
    %1430 = vdwg.mxu0
    %v1432 = vsel %vm265, %v829, 0
    %1434 = vmatprep.subr.mxu0 0.0
    %1435 = vmatpush1.xpose.msra.mxu0 %v747
    %1436 = vmatprep.subr.mxu0 0.0
    %1437 = vmatpush1.xpose.msra.mxu0 0.0
    %1438 = vmatprep.subr.mxu0 0.0
    %1439 = vmatpush1.xpose.msra.mxu0 0.0
    %1440 = vmatprep.subr.mxu0 0.0
    %1441 = vmatpush1.xpose.msra.mxu0 0.0
    %1442 = vmatprep.subr.mxu0 0.0
    %1443 = vmatpush1.xpose.msra.mxu0 0.0
    %1444 = vmatprep.subr.mxu0 0.0
    %1445 = vmatpush1.xpose.msra.mxu0 0.0
    %1446 = vmatprep.subr.mxu0 0.0
    %1447 = vmatpush1.xpose.msra.mxu0 0.0
    %1448 = vmatprep.subr.mxu0 0.0
    %1449 = vmatpush1.xpose.msra.mxu0 0.0
    %1450 = vmatprep.subr.mxu0 0.0
    %1451 = vmatpush1.xpose.msra.mxu0 0.0
    %1452 = vmatprep.subr.mxu0 0.0
    %1453 = vmatpush1.xpose.msra.mxu0 0.0
    %1454 = vmatprep.subr.mxu0 0.0
    %1455 = vmatpush1.xpose.msra.mxu0 0.0
    %1456 = vmatprep.subr.mxu0 0.0
    %1457 = vmatpush1.xpose.msra.mxu0 0.0
    %1458 = vmatprep.subr.mxu0 0.0
    %1459 = vmatpush1.xpose.msra.mxu0 0.0
    %1460 = vmatprep.subr.mxu0 0.0
    %1461 = vmatpush1.xpose.msra.mxu0 0.0
    %1462 = vmatprep.subr.mxu0 0.0
    %1463 = vmatpush1.xpose.msra.mxu0 0.0
    %1464 = vmatprep.subr.mxu0 0.0
    %1465 = vmatpush1.xpose.msra.mxu0 0.0
    %1466 = vmatprep.subr.mxu0 0.0
    %1467 = vmatpush1.xpose.msra.mxu0 0.0
    %1468 = vmatprep.subr.mxu0 0.0
    %1469 = vmatpush1.xpose.msra.mxu0 0.0
    %1470 = vmatprep.subr.mxu0 0.0
    %1471 = vmatpush1.xpose.msra.mxu0 0.0
    %1472 = vmatprep.subr.mxu0 0.0
    %1473 = vmatpush1.xpose.msra.mxu0 0.0
    %1474 = vmatprep.subr.mxu0 0.0
    %1475 = vmatpush1.xpose.msra.mxu0 0.0
    %1476 = vmatprep.subr.mxu0 0.0
    %1477 = vmatpush1.xpose.msra.mxu0 0.0
    %1478 = vmatprep.subr.mxu0 0.0
    %1479 = vmatpush1.xpose.msra.mxu0 0.0
    %1480 = vmatprep.subr.mxu0 0.0
    %1481 = vmatpush1.xpose.msra.mxu0 0.0
    %1482 = vmatprep.subr.mxu0 0.0
    %1483 = vmatpush1.xpose.msra.mxu0 0.0
    %1484 = vmatprep.subr.mxu0 0.0
    %1485 = vmatpush1.xpose.msra.mxu0 0.0
    %1486 = vmatprep.subr.mxu0 0.0
    %1487 = vmatpush1.xpose.msra.mxu0 0.0
    %1488 = vmatprep.subr.mxu0 0.0
    %1489 = vmatpush1.xpose.msra.mxu0 0.0
    %1490 = vmatprep.subr.mxu0 0.0
    %1491 = vmatpush1.xpose.msra.mxu0 0.0
    %1492 = vmatprep.subr.mxu0 0.0
    %1493 = vmatpush1.xpose.msra.mxu0 0.0
    %1494 = vmatprep.subr.mxu0 0.0
    %1495 = vmatpush1.xpose.msra.mxu0 0.0
    %1496 = vmatprep.subr.mxu0 0.0
    %1497 = vmatpush1.xpose.msra.mxu0 0.0
    %1498 = vmatprep.mubr.f32.mxu0 0.0
    %1499 = vmatmul.mubr.f32.gmra.mrb[0].mxu0 %v1432
    %v1500 = vpop.f32.mrb[0].mxu0
    %v1501 = vadd.f32 0.0, %v1500
    %v1502 = vpop.f32.mrb[0].mxu0
    %1503 = vdwg.mxu0
    %s1504 = scalar_lea.vmem %s19, 16
    %1505 = vst.msk [vmem:[%s1504] sm:$0xff] %vm1065, %v1360
    %s1506 = scalar_lea.vmem %s20, 8
    %1507 = vst.msk [vmem:[%s1506] sm:$0x7] %vm1067, %v1428
    %s1508 = scalar_lea.vmem %s21, 16
    %1509 = vst.msk [vmem:[%s1508] sm:$0xff] %vm1065, %v1501
    %1510 = vmatprep.subr.mxu0 0.0
    %1511 = vmatpush1.xpose.msra.mxu0 %v750
    %1512 = vmatprep.subr.mxu0 0.0
    %1513 = vmatpush1.xpose.msra.mxu0 0.0
    %1514 = vmatprep.subr.mxu0 0.0
    %1515 = vmatpush1.xpose.msra.mxu0 0.0
    %1516 = vmatprep.subr.mxu0 0.0
    %1517 = vmatpush1.xpose.msra.mxu0 0.0
    %1518 = vmatprep.subr.mxu0 0.0
    %1519 = vmatpush1.xpose.msra.mxu0 0.0
    %1520 = vmatprep.subr.mxu0 0.0
    %1521 = vmatpush1.xpose.msra.mxu0 0.0
    %1522 = vmatprep.subr.mxu0 0.0
    %1523 = vmatpush1.xpose.msra.mxu0 0.0
    %1524 = vmatprep.subr.mxu0 0.0
    %1525 = vmatpush1.xpose.msra.mxu0 0.0
    %1526 = vmatprep.subr.mxu0 0.0
    %1527 = vmatpush1.xpose.msra.mxu0 0.0
    %1528 = vmatprep.subr.mxu0 0.0
    %1529 = vmatpush1.xpose.msra.mxu0 0.0
    %1530 = vmatprep.subr.mxu0 0.0
    %1531 = vmatpush1.xpose.msra.mxu0 0.0
    %1532 = vmatprep.subr.mxu0 0.0
    %1533 = vmatpush1.xpose.msra.mxu0 0.0
    %1534 = vmatprep.subr.mxu0 0.0
    %1535 = vmatpush1.xpose.msra.mxu0 0.0
    %1536 = vmatprep.subr.mxu0 0.0
    %1537 = vmatpush1.xpose.msra.mxu0 0.0
    %1538 = vmatprep.subr.mxu0 0.0
    %1539 = vmatpush1.xpose.msra.mxu0 0.0
    %1540 = vmatprep.subr.mxu0 0.0
    %1541 = vmatpush1.xpose.msra.mxu0 0.0
    %1542 = vmatprep.subr.mxu0 0.0
    %1543 = vmatpush1.xpose.msra.mxu0 0.0
    %1544 = vmatprep.subr.mxu0 0.0
    %1545 = vmatpush1.xpose.msra.mxu0 0.0
    %1546 = vmatprep.subr.mxu0 0.0
    %1547 = vmatpush1.xpose.msra.mxu0 0.0
    %1548 = vmatprep.subr.mxu0 0.0
    %1549 = vmatpush1.xpose.msra.mxu0 0.0
    %1550 = vmatprep.subr.mxu0 0.0
    %1551 = vmatpush1.xpose.msra.mxu0 0.0
    %1552 = vmatprep.subr.mxu0 0.0
    %1553 = vmatpush1.xpose.msra.mxu0 0.0
    %1554 = vmatprep.subr.mxu0 0.0
    %1555 = vmatpush1.xpose.msra.mxu0 0.0
    %1556 = vmatprep.subr.mxu0 0.0
    %1557 = vmatpush1.xpose.msra.mxu0 0.0
    %1558 = vmatprep.subr.mxu0 0.0
    %1559 = vmatpush1.xpose.msra.mxu0 0.0
    %1560 = vmatprep.subr.mxu0 0.0
    %1561 = vmatpush1.xpose.msra.mxu0 0.0
    %1562 = vmatprep.subr.mxu0 0.0
    %1563 = vmatpush1.xpose.msra.mxu0 0.0
    %1564 = vmatprep.subr.mxu0 0.0
    %1565 = vmatpush1.xpose.msra.mxu0 0.0
    %1566 = vmatprep.subr.mxu0 0.0
    %1567 = vmatpush1.xpose.msra.mxu0 0.0
    %1568 = vmatprep.subr.mxu0 0.0
    %1569 = vmatpush1.xpose.msra.mxu0 0.0
    %1570 = vmatprep.subr.mxu0 0.0
    %1571 = vmatpush1.xpose.msra.mxu0 0.0
    %1572 = vmatprep.subr.mxu0 0.0
    %1573 = vmatpush1.xpose.msra.mxu0 0.0
    %1574 = vmatprep.mubr.f32.mxu0 0.0
    %1575 = vmatmul.mubr.f32.gmra.mrb[0].mxu0 %v270
    %v1576 = vpop.f32.mrb[0].mxu0
    %v1577 = vadd.f32 0.0, %v1576
    %v1578 = vpop.f32.mrb[0].mxu0
    %1579 = vdwg.mxu0
    %v1580 = vmul.f32 %v1577, 0.17677669
    %1581 = vmatprep.subr.mxu0 0.0
    %1582 = vmatpush1.xpose.msra.mxu0 %v750
    %1583 = vmatprep.subr.mxu0 0.0
    %1584 = vmatpush1.xpose.msra.mxu0 0.0
    %1585 = vmatprep.subr.mxu0 0.0
    %1586 = vmatpush1.xpose.msra.mxu0 0.0
    %1587 = vmatprep.subr.mxu0 0.0
    %1588 = vmatpush1.xpose.msra.mxu0 0.0
    %1589 = vmatprep.subr.mxu0 0.0
    %1590 = vmatpush1.xpose.msra.mxu0 0.0
    %1591 = vmatprep.subr.mxu0 0.0
    %1592 = vmatpush1.xpose.msra.mxu0 0.0
    %1593 = vmatprep.subr.mxu0 0.0
    %1594 = vmatpush1.xpose.msra.mxu0 0.0
    %1595 = vmatprep.subr.mxu0 0.0
    %1596 = vmatpush1.xpose.msra.mxu0 0.0
    %1597 = vmatprep.subr.mxu0 0.0
    %1598 = vmatpush1.xpose.msra.mxu0 0.0
    %1599 = vmatprep.subr.mxu0 0.0
    %1600 = vmatpush1.xpose.msra.mxu0 0.0
    %1601 = vmatprep.subr.mxu0 0.0
    %1602 = vmatpush1.xpose.msra.mxu0 0.0
    %1603 = vmatprep.subr.mxu0 0.0
    %1604 = vmatpush1.xpose.msra.mxu0 0.0
    %1605 = vmatprep.subr.mxu0 0.0
    %1606 = vmatpush1.xpose.msra.mxu0 0.0
    %1607 = vmatprep.subr.mxu0 0.0
    %1608 = vmatpush1.xpose.msra.mxu0 0.0
    %1609 = vmatprep.subr.mxu0 0.0
    %1610 = vmatpush1.xpose.msra.mxu0 0.0
    %1611 = vmatprep.subr.mxu0 0.0
    %1612 = vmatpush1.xpose.msra.mxu0 0.0
    %1613 = vmatprep.subr.mxu0 0.0
    %1614 = vmatpush1.xpose.msra.mxu0 0.0
    %1615 = vmatprep.subr.mxu0 0.0
    %1616 = vmatpush1.xpose.msra.mxu0 0.0
    %1617 = vmatprep.subr.mxu0 0.0
    %1618 = vmatpush1.xpose.msra.mxu0 0.0
    %1619 = vmatprep.subr.mxu0 0.0
    %1620 = vmatpush1.xpose.msra.mxu0 0.0
    %1621 = vmatprep.subr.mxu0 0.0
    %1622 = vmatpush1.xpose.msra.mxu0 0.0
    %1623 = vmatprep.subr.mxu0 0.0
    %1624 = vmatpush1.xpose.msra.mxu0 0.0
    %1625 = vmatprep.subr.mxu0 0.0
    %1626 = vmatpush1.xpose.msra.mxu0 0.0
    %1627 = vmatprep.subr.mxu0 0.0
    %1628 = vmatpush1.xpose.msra.mxu0 0.0
    %1629 = vmatprep.subr.mxu0 0.0
    %1630 = vmatpush1.xpose.msra.mxu0 0.0
    %1631 = vmatprep.subr.mxu0 0.0
    %1632 = vmatpush1.xpose.msra.mxu0 0.0
    %1633 = vmatprep.subr.mxu0 0.0
    %1634 = vmatpush1.xpose.msra.mxu0 0.0
    %1635 = vmatprep.subr.mxu0 0.0
    %1636 = vmatpush1.xpose.msra.mxu0 0.0
    %1637 = vmatprep.subr.mxu0 0.0
    %1638 = vmatpush1.xpose.msra.mxu0 0.0
    %1639 = vmatprep.subr.mxu0 0.0
    %1640 = vmatpush1.xpose.msra.mxu0 0.0
    %1641 = vmatprep.subr.mxu0 0.0
    %1642 = vmatpush1.xpose.msra.mxu0 0.0
    %1643 = vmatprep.subr.mxu0 0.0
    %1644 = vmatpush1.xpose.msra.mxu0 0.0
    %1645 = vmatprep.mubr.f32.mxu0 0.0
    %1646 = vmatmul.mubr.f32.gmra.mrb[0].mxu0 %v920
    %v1647 = vpop.f32.mrb[0].mxu0
    %v1648 = vadd.f32 %v917, %v1647
    %v1649 = vpop.f32.mrb[0].mxu0
    %1650 = vdwg.mxu0
    %v1652 = vsel %vm265, %v834, 0
    %1654 = vmatprep.subr.mxu0 0.0
    %1655 = vmatpush1.xpose.msra.mxu0 %v750
    %1656 = vmatprep.subr.mxu0 0.0
    %1657 = vmatpush1.xpose.msra.mxu0 0.0
    %1658 = vmatprep.subr.mxu0 0.0
    %1659 = vmatpush1.xpose.msra.mxu0 0.0
    %1660 = vmatprep.subr.mxu0 0.0
    %1661 = vmatpush1.xpose.msra.mxu0 0.0
    %1662 = vmatprep.subr.mxu0 0.0
    %1663 = vmatpush1.xpose.msra.mxu0 0.0
    %1664 = vmatprep.subr.mxu0 0.0
    %1665 = vmatpush1.xpose.msra.mxu0 0.0
    %1666 = vmatprep.subr.mxu0 0.0
    %1667 = vmatpush1.xpose.msra.mxu0 0.0
    %1668 = vmatprep.subr.mxu0 0.0
    %1669 = vmatpush1.xpose.msra.mxu0 0.0
    %1670 = vmatprep.subr.mxu0 0.0
    %1671 = vmatpush1.xpose.msra.mxu0 0.0
    %1672 = vmatprep.subr.mxu0 0.0
    %1673 = vmatpush1.xpose.msra.mxu0 0.0
    %1674 = vmatprep.subr.mxu0 0.0
    %1675 = vmatpush1.xpose.msra.mxu0 0.0
    %1676 = vmatprep.subr.mxu0 0.0
    %1677 = vmatpush1.xpose.msra.mxu0 0.0
    %1678 = vmatprep.subr.mxu0 0.0
    %1679 = vmatpush1.xpose.msra.mxu0 0.0
    %1680 = vmatprep.subr.mxu0 0.0
    %1681 = vmatpush1.xpose.msra.mxu0 0.0
    %1682 = vmatprep.subr.mxu0 0.0
    %1683 = vmatpush1.xpose.msra.mxu0 0.0
    %1684 = vmatprep.subr.mxu0 0.0
    %1685 = vmatpush1.xpose.msra.mxu0 0.0
    %1686 = vmatprep.subr.mxu0 0.0
    %1687 = vmatpush1.xpose.msra.mxu0 0.0
    %1688 = vmatprep.subr.mxu0 0.0
    %1689 = vmatpush1.xpose.msra.mxu0 0.0
    %1690 = vmatprep.subr.mxu0 0.0
    %1691 = vmatpush1.xpose.msra.mxu0 0.0
    %1692 = vmatprep.subr.mxu0 0.0
    %1693 = vmatpush1.xpose.msra.mxu0 0.0
    %1694 = vmatprep.subr.mxu0 0.0
    %1695 = vmatpush1.xpose.msra.mxu0 0.0
    %1696 = vmatprep.subr.mxu0 0.0
    %1697 = vmatpush1.xpose.msra.mxu0 0.0
    %1698 = vmatprep.subr.mxu0 0.0
    %1699 = vmatpush1.xpose.msra.mxu0 0.0
    %1700 = vmatprep.subr.mxu0 0.0
    %1701 = vmatpush1.xpose.msra.mxu0 0.0
    %1702 = vmatprep.subr.mxu0 0.0
    %1703 = vmatpush1.xpose.msra.mxu0 0.0
    %1704 = vmatprep.subr.mxu0 0.0
    %1705 = vmatpush1.xpose.msra.mxu0 0.0
    %1706 = vmatprep.subr.mxu0 0.0
    %1707 = vmatpush1.xpose.msra.mxu0 0.0
    %1708 = vmatprep.subr.mxu0 0.0
    %1709 = vmatpush1.xpose.msra.mxu0 0.0
    %1710 = vmatprep.subr.mxu0 0.0
    %1711 = vmatpush1.xpose.msra.mxu0 0.0
    %1712 = vmatprep.subr.mxu0 0.0
    %1713 = vmatpush1.xpose.msra.mxu0 0.0
    %1714 = vmatprep.subr.mxu0 0.0
    %1715 = vmatpush1.xpose.msra.mxu0 0.0
    %1716 = vmatprep.subr.mxu0 0.0
    %1717 = vmatpush1.xpose.msra.mxu0 0.0
    %1718 = vmatprep.mubr.f32.mxu0 0.0
    %1719 = vmatmul.mubr.f32.gmra.mrb[0].mxu0 %v1652
    %v1720 = vpop.f32.mrb[0].mxu0
    %v1721 = vadd.f32 0.0, %v1720
    %v1722 = vpop.f32.mrb[0].mxu0
    %1723 = vdwg.mxu0
    %s1724 = scalar_lea.vmem %s19, 24
    %1725 = vst.msk [vmem:[%s1724] sm:$0xff] %vm1065, %v1580
    %s1726 = scalar_lea.vmem %s20, 12
    %1727 = vst.msk [vmem:[%s1726] sm:$0x7] %vm1067, %v1648
    %s1728 = scalar_lea.vmem %s21, 24
    %1729 = vst.msk [vmem:[%s1728] sm:$0xff] %vm1065, %v1721
    // Predicated region
    $region90: #{caem_forward.1} parent=1 // pred_check
      _
    $region91: #{caem_forward.1} parent=1 // pred_check_branch
      %1731 = sbr.rel (0) target = $region93
    $region92: #{caem_forward.1} parent=1 // pred_region
      _
    $region93: #{caem_forward.1} parent=1 // pred_fallthru
      _
    // Predicated region
    $region94: #{caem_forward.1} parent=1 // pred_check
      _
    $region95: #{caem_forward.1} parent=1 // pred_check_branch
      %1733 = sbr.rel (0) target = $region97
    $region96: #{caem_forward.1} parent=1 // pred_region
      _
    $region97: #{caem_forward.1} parent=1 // pred_fallthru
      _
    // Predicated region
    $region98: #{caem_forward.1} parent=1 // pred_check
      _
    $region99: #{caem_forward.1} parent=1 // pred_check_branch
      %1735 = sbr.rel (0) target = $region101
    $region100: #{caem_forward.1} parent=1 // pred_region
      _
    $region101: #{caem_forward.1} parent=1 // pred_fallthru
      _
    // Predicated region
    $region102: #{caem_forward.1} parent=1 // pred_check
      _
    $region103: #{caem_forward.1} parent=1 // pred_check_branch
      %1737 = sbr.rel (0) target = $region105
    $region104: #{caem_forward.1} parent=1 // pred_region
      _
    $region105: #{caem_forward.1} parent=1 // pred_fallthru
      _
    // Predicated region
    $region106: #{caem_forward.1} parent=1 // pred_check
      _
    $region107: #{caem_forward.1} parent=1 // pred_check_branch
      %1739 = sbr.rel (0) target = $region109
    $region108: #{caem_forward.1} parent=1 // pred_region
      _
    $region109: #{caem_forward.1} parent=1 // pred_fallthru
      _
    // Predicated region
    $region110: #{caem_forward.1} parent=1 // pred_check
      _
    $region111: #{caem_forward.1} parent=1 // pred_check_branch
      %1741 = sbr.rel (0) target = $region113
    $region112: #{caem_forward.1} parent=1 // pred_region
      _
    $region113: #{caem_forward.1} parent=1 // pred_fallthru
      _
    // Predicated region
    $region114: #{caem_forward.1} parent=1 // pred_check
      _
    $region115: #{caem_forward.1} parent=1 // pred_check_branch
      %1743 = sbr.rel (0) target = $region117
    $region116: #{caem_forward.1} parent=1 // pred_region
      _
    $region117: #{caem_forward.1} parent=1 // pred_fallthru
      _
    // Predicated region
    $region118: #{caem_forward.1} parent=1 // pred_check
      _
    $region119: #{caem_forward.1} parent=1 // pred_check_branch
      %1745 = sbr.rel (0) target = $region121
    $region120: #{caem_forward.1} parent=1 // pred_region
      _
    $region121: #{caem_forward.1} parent=1 // pred_fallthru
      _
    // Predicated region
    $region122: #{caem_forward.1} parent=1 // pred_check
      _
    $region123: #{caem_forward.1} parent=1 // pred_check_branch
      %1747 = sbr.rel (0) target = $region125
    $region124: #{caem_forward.1} parent=1 // pred_region
      _
    $region125: #{caem_forward.1} parent=1 // pred_fallthru
      _
    // Predicated region
    $region126: #{caem_forward.1} parent=1 // pred_check
      _
    $region127: #{caem_forward.1} parent=1 // pred_check_branch
      %1749 = sbr.rel (0) target = $region129
    $region128: #{caem_forward.1} parent=1 // pred_region
      _
    $region129: #{caem_forward.1} parent=1 // pred_fallthru
      _
    // Predicated region
    $region130: #{caem_forward.1} parent=1 // pred_check
      _
    $region131: #{caem_forward.1} parent=1 // pred_check_branch
      %1751 = sbr.rel (0) target = $region133
    $region132: #{caem_forward.1} parent=1 // pred_region
      _
    $region133: #{caem_forward.1} parent=1 // pred_fallthru
      _
    // Predicated region
    $region134: #{caem_forward.1} parent=1 // pred_check
      _
    $region135: #{caem_forward.1} parent=1 // pred_check_branch
      %1753 = sbr.rel (0) target = $region137
    $region136: #{caem_forward.1} parent=1 // pred_region
      _
    $region137: #{caem_forward.1} parent=1 // pred_fallthru
      _
    %1754 = vsyncpa [#allocation3], 1
    %1755 = vsyncpa [#allocation5], 1
    %1756 = vsyncpa [#allocation8], 1
    %1757 = vsyncpa [#allocation11], 1

</llo_original>
